<compile_context>
chip_gen: v5e
topology: v5e:2x2
jax: 0.10.0
libtpu: 0.0.40
codegen_flags: <defaults>
</compile_context>

<pallas_src>
import math

import jax
import jax.numpy as jnp
from jax.experimental import pallas as pl
from jax.experimental.pallas import tpu as pltpu

LATENT = 32
HID = 512
NEG_SLOPE = 0.01  # PyTorch F.leaky_relu default negative_slope


def nu_z_kernel(z_ref, w1_ref, b1_ref, w2_ref, b2_ref, w3_ref, b3_ref,
                w4_ref, b4_ref, out_ref):
    # leaky_relu(x) == max(x, 0.01*x) for slope in (0,1): pure VPU ops.
    h = (jnp.dot(z_ref[...], w1_ref[...], preferred_element_type=jnp.float32)
         + b1_ref[...])
    h = jnp.maximum(h, NEG_SLOPE * h)

    h = (jnp.dot(h, w2_ref[...], preferred_element_type=jnp.float32)
         + b2_ref[...])
    h = jnp.maximum(h, NEG_SLOPE * h)

    h = (jnp.dot(h, w3_ref[...], preferred_element_type=jnp.float32)
         + b3_ref[...])
    h = jnp.maximum(h, NEG_SLOPE * h)

    out_ref[...] = (jnp.dot(h, w4_ref[...], preferred_element_type=jnp.float32)
                    + b4_ref[...])


def nu_z_forward(params, z):
    B = z.shape[0]
    return pl.pallas_call(
        nu_z_kernel,
        out_shape=jax.ShapeDtypeStruct((B, 1), jnp.float32),
        grid=(1,),
        in_specs=[
            pl.BlockSpec((B, LATENT), lambda i: (0, 0)),      # z
            pl.BlockSpec((LATENT, HID), lambda i: (0, 0)),    # W1^T
            pl.BlockSpec((1, HID), lambda i: (0, 0)),         # b1
            pl.BlockSpec((HID, HID), lambda i: (0, 0)),       # W2^T
            pl.BlockSpec((1, HID), lambda i: (0, 0)),         # b2
            pl.BlockSpec((HID, HID), lambda i: (0, 0)),       # W3^T
            pl.BlockSpec((1, HID), lambda i: (0, 0)),         # b3
            pl.BlockSpec((HID, 1), lambda i: (0, 0)),         # W4^T
            pl.BlockSpec((1, 1), lambda i: (0, 0)),           # b4
        ],
        out_specs=pl.BlockSpec((B, 1), lambda i: (0, 0)),
        compiler_params=pltpu.CompilerParams(
            dimension_semantics=("arbitrary",)),
    )(z, params["w1_t"], params["b1"], params["w2_t"], params["b2"],
      params["w3_t"], params["b3"], params["w4_t"], params["b4"])


def init_params(key):
    """PyTorch nn.Linear default init: U(-1/sqrt(fan_in), 1/sqrt(fan_in))."""
    ks = jax.random.split(key, 8)

    def u(k, shape, fan_in):
        bound = 1.0 / math.sqrt(fan_in)
        return jax.random.uniform(k, shape, jnp.float32, -bound, bound)

    # Stored pre-transposed to (in, out) for direct row-major matmuls.
    return {
        "w1_t": u(ks[0], (LATENT, HID), LATENT),
        "b1": u(ks[1], (1, HID), LATENT),
        "w2_t": u(ks[2], (HID, HID), HID),
        "b2": u(ks[3], (1, HID), HID),
        "w3_t": u(ks[4], (HID, HID), HID),
        "b3": u(ks[5], (1, HID), HID),
        "w4_t": u(ks[6], (HID, 1), HID),
        "b4": u(ks[7], (1, 1), HID),
    }


def reference_forward(params, z):
    def lrelu(x):
        return jnp.maximum(x, NEG_SLOPE * x)

    h = lrelu(z @ params["w1_t"] + params["b1"])
    h = lrelu(h @ params["w2_t"] + params["b2"])
    h = lrelu(h @ params["w3_t"] + params["b3"])
    return h @ params["w4_t"] + params["b4"]


if __name__ == "__main__":
    key = jax.random.PRNGKey(0)
    pkey, zkey = jax.random.split(key)
    params = init_params(pkey)

    B = 2
    z = jax.random.normal(zkey, (B, LATENT), jnp.float32)

    out = nu_z_forward(params, z)
    out = jax.block_until_ready(out)

    assert out.shape == (B, 1)
    assert bool(jnp.all(jnp.isfinite(out)))

    ref = reference_forward(params, z)
    assert bool(jnp.allclose(out, ref, rtol=1e-5, atol=1e-5))

    print("KERNEL_OK")
</pallas_src>

<mosaic_0001>
module attributes {stable_mosaic.version = 11 : i64} {
  func.func @nu_z_kernel(%arg0: i32, %arg1: memref<2x32xf32, #tpu.memory_space<vmem>>, %arg2: memref<32x512xf32, #tpu.memory_space<vmem>>, %arg3: memref<1x512xf32, #tpu.memory_space<vmem>>, %arg4: memref<512x512xf32, #tpu.memory_space<vmem>>, %arg5: memref<1x512xf32, #tpu.memory_space<vmem>>, %arg6: memref<512x512xf32, #tpu.memory_space<vmem>>, %arg7: memref<1x512xf32, #tpu.memory_space<vmem>>, %arg8: memref<512x1xf32, #tpu.memory_space<vmem>>, %arg9: memref<1x1xf32, #tpu.memory_space<vmem>>, %arg10: memref<2x1xf32, #tpu.memory_space<vmem>>) attributes {dimension_semantics = [#tpu.dimension_semantics<arbitrary>], iteration_bounds = array<i64: 1>, scalar_prefetch = 0 : i64, scratch_operands = 0 : i64, tpu.core_type = #tpu.core_type<tc>, window_params = [{pipeline_mode = #tpu.pipeline_mode<synchronous>, transform_indices = @transform_0, window_bounds = array<i64: 2, 32>}, {pipeline_mode = #tpu.pipeline_mode<synchronous>, transform_indices = @transform_1, window_bounds = array<i64: 32, 512>}, {pipeline_mode = #tpu.pipeline_mode<synchronous>, transform_indices = @transform_2, window_bounds = array<i64: 1, 512>}, {pipeline_mode = #tpu.pipeline_mode<synchronous>, transform_indices = @transform_3, window_bounds = array<i64: 512, 512>}, {pipeline_mode = #tpu.pipeline_mode<synchronous>, transform_indices = @transform_4, window_bounds = array<i64: 1, 512>}, {pipeline_mode = #tpu.pipeline_mode<synchronous>, transform_indices = @transform_5, window_bounds = array<i64: 512, 512>}, {pipeline_mode = #tpu.pipeline_mode<synchronous>, transform_indices = @transform_6, window_bounds = array<i64: 1, 512>}, {pipeline_mode = #tpu.pipeline_mode<synchronous>, transform_indices = @transform_7, window_bounds = array<i64: 512, 1>}, {pipeline_mode = #tpu.pipeline_mode<synchronous>, transform_indices = @transform_8, window_bounds = array<i64: 1, 1>}, {pipeline_mode = #tpu.pipeline_mode<synchronous>, transform_indices = @transform_9, window_bounds = array<i64: 2, 1>}]} {
    %c0 = arith.constant 0 : index
    %c0_0 = arith.constant 0 : index
    %0 = vector.load %arg1[%c0, %c0_0] : memref<2x32xf32, #tpu.memory_space<vmem>>, vector<2x32xf32>
    %c0_1 = arith.constant 0 : index
    %c0_2 = arith.constant 0 : index
    %1 = vector.load %arg2[%c0_1, %c0_2] : memref<32x512xf32, #tpu.memory_space<vmem>>, vector<32x512xf32>
    %cst = arith.constant dense<0.000000e+00> : vector<2x512xf32>
    %2 = tpu.matmul %0, %1, %cst {dimension_numbers = #tpu.dot_dimension_numbers<[1], [0], [0], [1], [0, 0, 1, 1], [], []>} : vector<2x32xf32>, vector<32x512xf32>, vector<2x512xf32> -> vector<2x512xf32>
    %c0_3 = arith.constant 0 : index
    %c0_4 = arith.constant 0 : index
    %3 = vector.load %arg3[%c0_3, %c0_4] : memref<1x512xf32, #tpu.memory_space<vmem>>, vector<1x512xf32>
    %4 = vector.broadcast %3 : vector<1x512xf32> to vector<2x512xf32>
    %5 = arith.addf %2, %4 : vector<2x512xf32>
    %cst_5 = arith.constant 0.00999999977 : f32
    %6 = vector.broadcast %cst_5 : f32 to vector<2x512xf32>
    %7 = arith.mulf %6, %5 : vector<2x512xf32>
    %8 = arith.maximumf %5, %7 : vector<2x512xf32>
    %c0_6 = arith.constant 0 : index
    %c0_7 = arith.constant 0 : index
    %9 = vector.load %arg4[%c0_6, %c0_7] : memref<512x512xf32, #tpu.memory_space<vmem>>, vector<512x512xf32>
    %cst_8 = arith.constant dense<0.000000e+00> : vector<2x512xf32>
    %10 = tpu.matmul %8, %9, %cst_8 {dimension_numbers = #tpu.dot_dimension_numbers<[1], [0], [0], [1], [0, 0, 1, 1], [], []>} : vector<2x512xf32>, vector<512x512xf32>, vector<2x512xf32> -> vector<2x512xf32>
    %c0_9 = arith.constant 0 : index
    %c0_10 = arith.constant 0 : index
    %11 = vector.load %arg5[%c0_9, %c0_10] : memref<1x512xf32, #tpu.memory_space<vmem>>, vector<1x512xf32>
    %12 = vector.broadcast %11 : vector<1x512xf32> to vector<2x512xf32>
    %13 = arith.addf %10, %12 : vector<2x512xf32>
    %cst_11 = arith.constant 0.00999999977 : f32
    %14 = vector.broadcast %cst_11 : f32 to vector<2x512xf32>
    %15 = arith.mulf %14, %13 : vector<2x512xf32>
    %16 = arith.maximumf %13, %15 : vector<2x512xf32>
    %c0_12 = arith.constant 0 : index
    %c0_13 = arith.constant 0 : index
    %17 = vector.load %arg6[%c0_12, %c0_13] : memref<512x512xf32, #tpu.memory_space<vmem>>, vector<512x512xf32>
    %cst_14 = arith.constant dense<0.000000e+00> : vector<2x512xf32>
    %18 = tpu.matmul %16, %17, %cst_14 {dimension_numbers = #tpu.dot_dimension_numbers<[1], [0], [0], [1], [0, 0, 1, 1], [], []>} : vector<2x512xf32>, vector<512x512xf32>, vector<2x512xf32> -> vector<2x512xf32>
    %c0_15 = arith.constant 0 : index
    %c0_16 = arith.constant 0 : index
    %19 = vector.load %arg7[%c0_15, %c0_16] : memref<1x512xf32, #tpu.memory_space<vmem>>, vector<1x512xf32>
    %20 = vector.broadcast %19 : vector<1x512xf32> to vector<2x512xf32>
    %21 = arith.addf %18, %20 : vector<2x512xf32>
    %cst_17 = arith.constant 0.00999999977 : f32
    %22 = vector.broadcast %cst_17 : f32 to vector<2x512xf32>
    %23 = arith.mulf %22, %21 : vector<2x512xf32>
    %24 = arith.maximumf %21, %23 : vector<2x512xf32>
    %c0_18 = arith.constant 0 : index
    %c0_19 = arith.constant 0 : index
    %25 = vector.load %arg8[%c0_18, %c0_19] : memref<512x1xf32, #tpu.memory_space<vmem>>, vector<512x1xf32>
    %cst_20 = arith.constant dense<0.000000e+00> : vector<2x1xf32>
    %26 = tpu.matmul %24, %25, %cst_20 {dimension_numbers = #tpu.dot_dimension_numbers<[1], [0], [0], [1], [0, 0, 1, 1], [], []>} : vector<2x512xf32>, vector<512x1xf32>, vector<2x1xf32> -> vector<2x1xf32>
    %c0_21 = arith.constant 0 : index
    %c0_22 = arith.constant 0 : index
    %27 = vector.load %arg9[%c0_21, %c0_22] : memref<1x1xf32, #tpu.memory_space<vmem>>, vector<1x1xf32>
    %28 = vector.broadcast %27 : vector<1x1xf32> to vector<2x1xf32>
    %29 = arith.addf %26, %28 : vector<2x1xf32>
    %c0_23 = arith.constant 0 : index
    %c0_24 = arith.constant 0 : index
    %30 = vector.load %arg10[%c0_23, %c0_24] : memref<2x1xf32, #tpu.memory_space<vmem>>, vector<2x1xf32>
    tpu.vector_store %arg10[%c0_23, %c0_24], %29 {strides = array<i32>} : memref<2x1xf32, #tpu.memory_space<vmem>>, vector<2x1xf32>,
    return
  }
  func.func @transform_0(%arg0: i32) -> (i32, i32) {
    %c0_i32 = arith.constant 0 : i32
    %c0_i32_0 = arith.constant 0 : i32
    %c0_i32_1 = arith.constant 0 : i32
    return %c0_i32, %c0_i32_0 : i32, i32
  }
  func.func @transform_1(%arg0: i32) -> (i32, i32) {
    %c0_i32 = arith.constant 0 : i32
    %c0_i32_0 = arith.constant 0 : i32
    %c0_i32_1 = arith.constant 0 : i32
    return %c0_i32, %c0_i32_0 : i32, i32
  }
  func.func @transform_2(%arg0: i32) -> (i32, i32) {
    %c0_i32 = arith.constant 0 : i32
    %c0_i32_0 = arith.constant 0 : i32
    %c0_i32_1 = arith.constant 0 : i32
    return %c0_i32, %c0_i32_0 : i32, i32
  }
  func.func @transform_3(%arg0: i32) -> (i32, i32) {
    %c0_i32 = arith.constant 0 : i32
    %c0_i32_0 = arith.constant 0 : i32
    %c0_i32_1 = arith.constant 0 : i32
    return %c0_i32, %c0_i32_0 : i32, i32
  }
  func.func @transform_4(%arg0: i32) -> (i32, i32) {
    %c0_i32 = arith.constant 0 : i32
    %c0_i32_0 = arith.constant 0 : i32
    %c0_i32_1 = arith.constant 0 : i32
    return %c0_i32, %c0_i32_0 : i32, i32
  }
  func.func @transform_5(%arg0: i32) -> (i32, i32) {
    %c0_i32 = arith.constant 0 : i32
    %c0_i32_0 = arith.constant 0 : i32
    %c0_i32_1 = arith.constant 0 : i32
    return %c0_i32, %c0_i32_0 : i32, i32
  }
  func.func @transform_6(%arg0: i32) -> (i32, i32) {
    %c0_i32 = arith.constant 0 : i32
    %c0_i32_0 = arith.constant 0 : i32
    %c0_i32_1 = arith.constant 0 : i32
    return %c0_i32, %c0_i32_0 : i32, i32
  }
  func.func @transform_7(%arg0: i32) -> (i32, i32) {
    %c0_i32 = arith.constant 0 : i32
    %c0_i32_0 = arith.constant 0 : i32
    %c0_i32_1 = arith.constant 0 : i32
    return %c0_i32, %c0_i32_0 : i32, i32
  }
  func.func @transform_8(%arg0: i32) -> (i32, i32) {
    %c0_i32 = arith.constant 0 : i32
    %c0_i32_0 = arith.constant 0 : i32
    %c0_i32_1 = arith.constant 0 : i32
    return %c0_i32, %c0_i32_0 : i32, i32
  }
  func.func @transform_9(%arg0: i32) -> (i32, i32) {
    %c0_i32 = arith.constant 0 : i32
    %c0_i32_0 = arith.constant 0 : i32
    %c0_i32_1 = arith.constant 0 : i32
    return %c0_i32, %c0_i32_0 : i32, i32
  }
}

</mosaic_0001>

<llo_original>
// kernel: tpu_custom_call.1
$region0: #{tpu_custom_call.1}
  #allocation0 [shape = 'u32[]', space=smem, size = 0x4, offset = 0x4, fixed_abs, tag = 'smem constant byte address 0x4 - core index']
  #allocation1 [shape = 'u32[72,128]{1,0:T(1,128)}', space=vmem, size = 0x9000, scoped, tag = 'internal scratch']
  #allocation2 [shape = 'f32[1,1]{1,0:T(1,128)S(1)}', space=vmem, size = 0x200, scoped, tag = 'scoped memory for tpu_custom_call.1']
  %s0 = inlined_call_operand.vmem [shape: f32[2,32], index: 0, kind: input, shape index: {}]
  %s1 = inlined_call_operand.vmem [shape: f32[32,512], index: 1, kind: input, shape index: {}]
  %s2 = inlined_call_operand.vmem [shape: f32[1,512], index: 2, kind: input, shape index: {}]
  %s3 = inlined_call_operand.hbm [shape: f32[512,512], index: 3, kind: input, shape index: {}]
  %s4 = inlined_call_operand.vmem [shape: f32[1,512], index: 4, kind: input, shape index: {}]
  %s5 = inlined_call_operand.hbm [shape: f32[512,512], index: 5, kind: input, shape index: {}]
  %s6 = inlined_call_operand.vmem [shape: f32[1,512], index: 6, kind: input, shape index: {}]
  %s7 = inlined_call_operand.vmem [shape: f32[512,1], index: 7, kind: input, shape index: {}]
  %s8 = inlined_call_operand.<no memory space> [shape: f32[1,1], index: 8, kind: input, shape index: {}]
  %s9 = inlined_call_operand.vmem [shape: f32[2,1], index: 9, kind: output, shape index: {}]
  %s10 = sld [smem:[#allocation0]]
  $region54: #{tpu_custom_call.1} parent=0
    _
  %s12 = ssub.s32 1, %s10
  %s13 = scalar_select 0, %s12, %s10
  %v14 = vstv %s8
  %15 = vst [vmem:[#allocation2] sm:$0x1] %v14
  $region1: #{tpu_custom_call.1} parent=0
    #allocation3 [shape = 'u8[1048576]{0}', space=vmem, size = 0x100000, scoped, tag = 'input window, operand 3, single buffered']
    #allocation4 [shape = 's32[1]{0}', space=sflag, size = 0x4, scoped, tag = 'scoped memory for tpu_custom_call.1']
    #allocation5 [shape = 'u8[1048576]{0}', space=vmem, size = 0x100000, scoped, tag = 'input window, operand 5, single buffered']
    #allocation6 [shape = 's32[1]{0}', space=sflag, size = 0x4, scoped, tag = 'scoped memory for tpu_custom_call.1']
    %16 = vsyncpa [#allocation4], 0
    %17 = vsyncpa [#allocation6], 0
    // Predicated region
    $region2: #{tpu_custom_call.1} parent=1 // pred_check
      _
    $region3: #{tpu_custom_call.1} parent=1 // pred_check_branch
      %19 = sbr.rel (0) target = $region5
    $region4: #{tpu_custom_call.1} parent=1 // pred_region
      _
    $region5: #{tpu_custom_call.1} parent=1 // pred_fallthru
      _
    // Predicated region
    $region6: #{tpu_custom_call.1} parent=1 // pred_check
      _
    $region7: #{tpu_custom_call.1} parent=1 // pred_check_branch
      %21 = sbr.rel (0) target = $region9
    $region8: #{tpu_custom_call.1} parent=1 // pred_region
      _
    $region9: #{tpu_custom_call.1} parent=1 // pred_fallthru
      _
    // Predicated region
    $region10: #{tpu_custom_call.1} parent=1 // pred_check
      _
    $region11: #{tpu_custom_call.1} parent=1 // pred_check_branch
      %23 = sbr.rel (0) target = $region13
    $region12: #{tpu_custom_call.1} parent=1 // pred_region
      _
    $region13: #{tpu_custom_call.1} parent=1 // pred_fallthru
      _
    // Predicated region
    $region14: #{tpu_custom_call.1} parent=1 // pred_check
      _
    $region15: #{tpu_custom_call.1} parent=1 // pred_check_branch
      %25 = sbr.rel (0) target = $region17
    $region16: #{tpu_custom_call.1} parent=1 // pred_region
      %27 = vsyncadd [#allocation4], 0
      %s28 = sshll.u32 %s3, 4
      %s29 = int_to_ptr.hbm [resolvable:$true] %s28
      %s30 = sshll.u32 [#allocation3], 4
      %s31 = int_to_ptr.vmem [resolvable:$true] %s30
      %36 = dma.hbm_to_vmem [thread:$0]  %s29, 32768, %s31, [#allocation4], 512, 512, 32
    $region17: #{tpu_custom_call.1} parent=1 // pred_fallthru
      _
    // Predicated region
    $region18: #{tpu_custom_call.1} parent=1 // pred_check
      _
    $region19: #{tpu_custom_call.1} parent=1 // pred_check_branch
      %38 = sbr.rel (0) target = $region21
    $region20: #{tpu_custom_call.1} parent=1 // pred_region
      _
    $region21: #{tpu_custom_call.1} parent=1 // pred_fallthru
      _
    // Predicated region
    $region22: #{tpu_custom_call.1} parent=1 // pred_check
      _
    $region23: #{tpu_custom_call.1} parent=1 // pred_check_branch
      %40 = sbr.rel (0) target = $region25
    $region24: #{tpu_custom_call.1} parent=1 // pred_region
      %42 = vsyncadd [#allocation6], 0
      %s43 = sshll.u32 %s5, 4
      %s44 = int_to_ptr.hbm [resolvable:$true] %s43
      %s45 = sshll.u32 [#allocation5], 4
      %s46 = int_to_ptr.vmem [resolvable:$true] %s45
      %51 = dma.hbm_to_vmem [thread:$0]  %s44, 32768, %s46, [#allocation6], 512, 512, 32
    $region25: #{tpu_custom_call.1} parent=1 // pred_fallthru
      _
    // Predicated region
    $region26: #{tpu_custom_call.1} parent=1 // pred_check
      _
    $region27: #{tpu_custom_call.1} parent=1 // pred_check_branch
      %53 = sbr.rel (0) target = $region29
    $region28: #{tpu_custom_call.1} parent=1 // pred_region
      _
    $region29: #{tpu_custom_call.1} parent=1 // pred_fallthru
      _
    // Predicated region
    $region30: #{tpu_custom_call.1} parent=1 // pred_check
      _
    $region31: #{tpu_custom_call.1} parent=1 // pred_check_branch
      %55 = sbr.rel (0) target = $region33
    $region32: #{tpu_custom_call.1} parent=1 // pred_region
      _
    $region33: #{tpu_custom_call.1} parent=1 // pred_fallthru
      _
    // Predicated region
    $region34: #{tpu_custom_call.1} parent=1 // pred_check
      _
    $region35: #{tpu_custom_call.1} parent=1 // pred_check_branch
      %57 = sbr.rel (0) target = $region37
    $region36: #{tpu_custom_call.1} parent=1 // pred_region
      _
    $region37: #{tpu_custom_call.1} parent=1 // pred_fallthru
      _
    // Predicated region
    $region38: #{tpu_custom_call.1} parent=1 // pred_check
      _
    $region39: #{tpu_custom_call.1} parent=1 // pred_check_branch
      %59 = sbr.rel (0) target = $region41
    $region40: #{tpu_custom_call.1} parent=1 // pred_region
      %61 = dma.done [#allocation4], 32768
    $region41: #{tpu_custom_call.1} parent=1 // pred_fallthru
      _
    // Predicated region
    $region42: #{tpu_custom_call.1} parent=1 // pred_check
      _
    $region43: #{tpu_custom_call.1} parent=1 // pred_check_branch
      %63 = sbr.rel (0) target = $region45
    $region44: #{tpu_custom_call.1} parent=1 // pred_region
      %65 = dma.done [#allocation6], 32768
    $region45: #{tpu_custom_call.1} parent=1 // pred_fallthru
      _
    %v66 = vld [vmem:[%s0] sm:$0x3]
    %v67 = vld [vmem:[%s1] sm:$0xff]
    %v68 = vld [vmem:[%s1 + $0x8] sm:$0xff]
    %v69 = vld [vmem:[%s1 + $0x10] sm:$0xff]
    %v70 = vld [vmem:[%s1 + $0x18] sm:$0xff]
    %v71 = vld [vmem:[%s1 + $0x20] sm:$0xff]
    %v72 = vld [vmem:[%s1 + $0x28] sm:$0xff]
    %v73 = vld [vmem:[%s1 + $0x30] sm:$0xff]
    %v74 = vld [vmem:[%s1 + $0x38] sm:$0xff]
    %v75 = vld [vmem:[%s1 + $0x40] sm:$0xff]
    %v76 = vld [vmem:[%s1 + $0x48] sm:$0xff]
    %v77 = vld [vmem:[%s1 + $0x50] sm:$0xff]
    %v78 = vld [vmem:[%s1 + $0x58] sm:$0xff]
    %v79 = vld [vmem:[%s1 + $0x60] sm:$0xff]
    %v80 = vld [vmem:[%s1 + $0x68] sm:$0xff]
    %v81 = vld [vmem:[%s1 + $0x70] sm:$0xff]
    %v82 = vld [vmem:[%s1 + $0x78] sm:$0xff]
    %v83 = vld [vmem:[%s2] sm:$0xf]
    %v85 = vperm.slane %v83, 0
    %v86 = vperm.slane %v83, 1
    %v87 = vperm.slane %v83, 2
    %v88 = vperm.slane %v83, 3
    %vm93 = vcmask 261120
    %v95 = vsel %vm93, %v66, 0
    %97 = vmatpush.msra.mxu0 0.0
    %98 = vmatpush.msra.mxu0 0.0
    %99 = vmatpush.msra.mxu0 0.0
    %100 = vmatpush.msra.mxu0 0.0
    %101 = vmatpush.msra.mxu0 0.0
    %102 = vmatpush.msra.mxu0 0.0
    %103 = vmatpush.msra.mxu0 0.0
    %104 = vmatpush.msra.mxu0 0.0
    %105 = vmatpush.msra.mxu0 0.0
    %106 = vmatpush.msra.mxu0 0.0
    %107 = vmatpush.msra.mxu0 0.0
    %108 = vmatpush.msra.mxu0 0.0
    %109 = vmatpush.msra.mxu0 %v79
    %110 = vmatpush.msra.mxu0 %v75
    %111 = vmatpush.msra.mxu0 %v71
    %112 = vmatpush.msra.mxu0 %v67
    %113 = vmatmul.f32.gmra.mxu0 %v95
    %v114 = vpop.f32.mrf.mxu0
    %v115 = vadd.f32 %v85, %v114
    %116 = vdwg.mxu0
    %117 = vmatpush.msra.mxu0 0.0
    %118 = vmatpush.msra.mxu0 0.0
    %119 = vmatpush.msra.mxu0 0.0
    %120 = vmatpush.msra.mxu0 0.0
    %121 = vmatpush.msra.mxu0 0.0
    %122 = vmatpush.msra.mxu0 0.0
    %123 = vmatpush.msra.mxu0 0.0
    %124 = vmatpush.msra.mxu0 0.0
    %125 = vmatpush.msra.mxu0 0.0
    %126 = vmatpush.msra.mxu0 0.0
    %127 = vmatpush.msra.mxu0 0.0
    %128 = vmatpush.msra.mxu0 0.0
    %129 = vmatpush.msra.mxu0 %v80
    %130 = vmatpush.msra.mxu0 %v76
    %131 = vmatpush.msra.mxu0 %v72
    %132 = vmatpush.msra.mxu0 %v68
    %133 = vmatmul.f32.gmra.mxu0 %v95
    %v134 = vpop.f32.mrf.mxu0
    %v135 = vadd.f32 %v86, %v134
    %136 = vdwg.mxu0
    %137 = vmatpush.msra.mxu0 0.0
    %138 = vmatpush.msra.mxu0 0.0
    %139 = vmatpush.msra.mxu0 0.0
    %140 = vmatpush.msra.mxu0 0.0
    %141 = vmatpush.msra.mxu0 0.0
    %142 = vmatpush.msra.mxu0 0.0
    %143 = vmatpush.msra.mxu0 0.0
    %144 = vmatpush.msra.mxu0 0.0
    %145 = vmatpush.msra.mxu0 0.0
    %146 = vmatpush.msra.mxu0 0.0
    %147 = vmatpush.msra.mxu0 0.0
    %148 = vmatpush.msra.mxu0 0.0
    %149 = vmatpush.msra.mxu0 %v81
    %150 = vmatpush.msra.mxu0 %v77
    %151 = vmatpush.msra.mxu0 %v73
    %152 = vmatpush.msra.mxu0 %v69
    %153 = vmatmul.f32.gmra.mxu0 %v95
    %v154 = vpop.f32.mrf.mxu0
    %v155 = vadd.f32 %v87, %v154
    %156 = vdwg.mxu0
    %157 = vmatpush.msra.mxu0 0.0
    %158 = vmatpush.msra.mxu0 0.0
    %159 = vmatpush.msra.mxu0 0.0
    %160 = vmatpush.msra.mxu0 0.0
    %161 = vmatpush.msra.mxu0 0.0
    %162 = vmatpush.msra.mxu0 0.0
    %163 = vmatpush.msra.mxu0 0.0
    %164 = vmatpush.msra.mxu0 0.0
    %165 = vmatpush.msra.mxu0 0.0
    %166 = vmatpush.msra.mxu0 0.0
    %167 = vmatpush.msra.mxu0 0.0
    %168 = vmatpush.msra.mxu0 0.0
    %169 = vmatpush.msra.mxu0 %v82
    %170 = vmatpush.msra.mxu0 %v78
    %171 = vmatpush.msra.mxu0 %v74
    %172 = vmatpush.msra.mxu0 %v70
    %173 = vmatmul.f32.gmra.mxu0 %v95
    %v174 = vpop.f32.mrf.mxu0
    %v175 = vadd.f32 %v88, %v174
    %176 = vdwg.mxu0
    %v177 = vmul.f32 %v115, 0.01
    %v178 = vmul.f32 %v135, 0.01
    %v179 = vmul.f32 %v155, 0.01
    %v180 = vmul.f32 %v175, 0.01
    %v181 = vmax.f32 %v115, %v177
    %v182 = vmax.f32 %v135, %v178
    %v183 = vmax.f32 %v155, %v179
    %v184 = vmax.f32 %v175, %v180
    %v185 = vld [vmem:[#allocation3] sm:$0xff]
    %v186 = vld [vmem:[#allocation3 + $0x8] sm:$0xff]
    %v187 = vld [vmem:[#allocation3 + $0x10] sm:$0xff]
    %v188 = vld [vmem:[#allocation3 + $0x18] sm:$0xff]
    %v189 = vld [vmem:[#allocation3 + $0x20] sm:$0xff]
    %v190 = vld [vmem:[#allocation3 + $0x28] sm:$0xff]
    %v191 = vld [vmem:[#allocation3 + $0x30] sm:$0xff]
    %v192 = vld [vmem:[#allocation3 + $0x38] sm:$0xff]
    %v193 = vld [vmem:[#allocation3 + $0x40] sm:$0xff]
    %v194 = vld [vmem:[#allocation3 + $0x48] sm:$0xff]
    %v195 = vld [vmem:[#allocation3 + $0x50] sm:$0xff]
    %v196 = vld [vmem:[#allocation3 + $0x58] sm:$0xff]
    %v197 = vld [vmem:[#allocation3 + $0x60] sm:$0xff]
    %v198 = vld [vmem:[#allocation3 + $0x68] sm:$0xff]
    %v199 = vld [vmem:[#allocation3 + $0x70] sm:$0xff]
    %v200 = vld [vmem:[#allocation3 + $0x78] sm:$0xff]
    %v201 = vld [vmem:[#allocation3 + $0x80] sm:$0xff]
    %v202 = vld [vmem:[#allocation3 + $0x88] sm:$0xff]
    %v203 = vld [vmem:[#allocation3 + $0x90] sm:$0xff]
    %v204 = vld [vmem:[#allocation3 + $0x98] sm:$0xff]
    %v205 = vld [vmem:[#allocation3 + $0xa0] sm:$0xff]
    %v206 = vld [vmem:[#allocation3 + $0xa8] sm:$0xff]
    %v207 = vld [vmem:[#allocation3 + $0xb0] sm:$0xff]
    %v208 = vld [vmem:[#allocation3 + $0xb8] sm:$0xff]
    %v209 = vld [vmem:[#allocation3 + $0xc0] sm:$0xff]
    %v210 = vld [vmem:[#allocation3 + $0xc8] sm:$0xff]
    %v211 = vld [vmem:[#allocation3 + $0xd0] sm:$0xff]
    %v212 = vld [vmem:[#allocation3 + $0xd8] sm:$0xff]
    %v213 = vld [vmem:[#allocation3 + $0xe0] sm:$0xff]
    %v214 = vld [vmem:[#allocation3 + $0xe8] sm:$0xff]
    %v215 = vld [vmem:[#allocation3 + $0xf0] sm:$0xff]
    %v216 = vld [vmem:[#allocation3 + $0xf8] sm:$0xff]
    %v217 = vld [vmem:[#allocation3 + $0x100] sm:$0xff]
    %v218 = vld [vmem:[#allocation3 + $0x108] sm:$0xff]
    %v219 = vld [vmem:[#allocation3 + $0x110] sm:$0xff]
    %v220 = vld [vmem:[#allocation3 + $0x118] sm:$0xff]
    %v221 = vld [vmem:[#allocation3 + $0x120] sm:$0xff]
    %v222 = vld [vmem:[#allocation3 + $0x128] sm:$0xff]
    %v223 = vld [vmem:[#allocation3 + $0x130] sm:$0xff]
    %v224 = vld [vmem:[#allocation3 + $0x138] sm:$0xff]
    %v225 = vld [vmem:[#allocation3 + $0x140] sm:$0xff]
    %v226 = vld [vmem:[#allocation3 + $0x148] sm:$0xff]
    %v227 = vld [vmem:[#allocation3 + $0x150] sm:$0xff]
    %v228 = vld [vmem:[#allocation3 + $0x158] sm:$0xff]
    %v229 = vld [vmem:[#allocation3 + $0x160] sm:$0xff]
    %v230 = vld [vmem:[#allocation3 + $0x168] sm:$0xff]
    %v231 = vld [vmem:[#allocation3 + $0x170] sm:$0xff]
    %v232 = vld [vmem:[#allocation3 + $0x178] sm:$0xff]
    %v233 = vld [vmem:[#allocation3 + $0x180] sm:$0xff]
    %v234 = vld [vmem:[#allocation3 + $0x188] sm:$0xff]
    %v235 = vld [vmem:[#allocation3 + $0x190] sm:$0xff]
    %v236 = vld [vmem:[#allocation3 + $0x198] sm:$0xff]
    %v237 = vld [vmem:[#allocation3 + $0x1a0] sm:$0xff]
    %v238 = vld [vmem:[#allocation3 + $0x1a8] sm:$0xff]
    %v239 = vld [vmem:[#allocation3 + $0x1b0] sm:$0xff]
    %v240 = vld [vmem:[#allocation3 + $0x1b8] sm:$0xff]
    %v241 = vld [vmem:[#allocation3 + $0x1c0] sm:$0xff]
    %v242 = vld [vmem:[#allocation3 + $0x1c8] sm:$0xff]
    %v243 = vld [vmem:[#allocation3 + $0x1d0] sm:$0xff]
    %v244 = vld [vmem:[#allocation3 + $0x1d8] sm:$0xff]
    %v245 = vld [vmem:[#allocation3 + $0x1e0] sm:$0xff]
    %v246 = vld [vmem:[#allocation3 + $0x1e8] sm:$0xff]
    %v247 = vld [vmem:[#allocation3 + $0x1f0] sm:$0xff]
    %v248 = vld [vmem:[#allocation3 + $0x1f8] sm:$0xff]
    %v249 = vld [vmem:[#allocation3 + $0x200] sm:$0xff]
    %v250 = vld [vmem:[#allocation3 + $0x208] sm:$0xff]
    %v251 = vld [vmem:[#allocation3 + $0x210] sm:$0xff]
    %v252 = vld [vmem:[#allocation3 + $0x218] sm:$0xff]
    %v253 = vld [vmem:[#allocation3 + $0x220] sm:$0xff]
    %v254 = vld [vmem:[#allocation3 + $0x228] sm:$0xff]
    %v255 = vld [vmem:[#allocation3 + $0x230] sm:$0xff]
    %v256 = vld [vmem:[#allocation3 + $0x238] sm:$0xff]
    %v257 = vld [vmem:[#allocation3 + $0x240] sm:$0xff]
    %v258 = vld [vmem:[#allocation3 + $0x248] sm:$0xff]
    %v259 = vld [vmem:[#allocation3 + $0x250] sm:$0xff]
    %v260 = vld [vmem:[#allocation3 + $0x258] sm:$0xff]
    %v261 = vld [vmem:[#allocation3 + $0x260] sm:$0xff]
    %v262 = vld [vmem:[#allocation3 + $0x268] sm:$0xff]
    %v263 = vld [vmem:[#allocation3 + $0x270] sm:$0xff]
    %v264 = vld [vmem:[#allocation3 + $0x278] sm:$0xff]
    %v265 = vld [vmem:[#allocation3 + $0x280] sm:$0xff]
    %v266 = vld [vmem:[#allocation3 + $0x288] sm:$0xff]
    %v267 = vld [vmem:[#allocation3 + $0x290] sm:$0xff]
    %v268 = vld [vmem:[#allocation3 + $0x298] sm:$0xff]
    %v269 = vld [vmem:[#allocation3 + $0x2a0] sm:$0xff]
    %v270 = vld [vmem:[#allocation3 + $0x2a8] sm:$0xff]
    %v271 = vld [vmem:[#allocation3 + $0x2b0] sm:$0xff]
    %v272 = vld [vmem:[#allocation3 + $0x2b8] sm:$0xff]
    %v273 = vld [vmem:[#allocation3 + $0x2c0] sm:$0xff]
    %v274 = vld [vmem:[#allocation3 + $0x2c8] sm:$0xff]
    %v275 = vld [vmem:[#allocation3 + $0x2d0] sm:$0xff]
    %v276 = vld [vmem:[#allocation3 + $0x2d8] sm:$0xff]
    %v277 = vld [vmem:[#allocation3 + $0x2e0] sm:$0xff]
    %v278 = vld [vmem:[#allocation3 + $0x2e8] sm:$0xff]
    %v279 = vld [vmem:[#allocation3 + $0x2f0] sm:$0xff]
    %v280 = vld [vmem:[#allocation3 + $0x2f8] sm:$0xff]
    %v281 = vld [vmem:[#allocation3 + $0x300] sm:$0xff]
    %v282 = vld [vmem:[#allocation3 + $0x308] sm:$0xff]
    %v283 = vld [vmem:[#allocation3 + $0x310] sm:$0xff]
    %v284 = vld [vmem:[#allocation3 + $0x318] sm:$0xff]
    %v285 = vld [vmem:[#allocation3 + $0x320] sm:$0xff]
    %v286 = vld [vmem:[#allocation3 + $0x328] sm:$0xff]
    %v287 = vld [vmem:[#allocation3 + $0x330] sm:$0xff]
    %v288 = vld [vmem:[#allocation3 + $0x338] sm:$0xff]
    %v289 = vld [vmem:[#allocation3 + $0x340] sm:$0xff]
    %v290 = vld [vmem:[#allocation3 + $0x348] sm:$0xff]
    %v291 = vld [vmem:[#allocation3 + $0x350] sm:$0xff]
    %v292 = vld [vmem:[#allocation3 + $0x358] sm:$0xff]
    %v293 = vld [vmem:[#allocation3 + $0x360] sm:$0xff]
    %v294 = vld [vmem:[#allocation3 + $0x368] sm:$0xff]
    %v295 = vld [vmem:[#allocation3 + $0x370] sm:$0xff]
    %v296 = vld [vmem:[#allocation3 + $0x378] sm:$0xff]
    %v297 = vld [vmem:[#allocation3 + $0x380] sm:$0xff]
    %v298 = vld [vmem:[#allocation3 + $0x388] sm:$0xff]
    %v299 = vld [vmem:[#allocation3 + $0x390] sm:$0xff]
    %v300 = vld [vmem:[#allocation3 + $0x398] sm:$0xff]
    %v301 = vld [vmem:[#allocation3 + $0x3a0] sm:$0xff]
    %v302 = vld [vmem:[#allocation3 + $0x3a8] sm:$0xff]
    %v303 = vld [vmem:[#allocation3 + $0x3b0] sm:$0xff]
    %v304 = vld [vmem:[#allocation3 + $0x3b8] sm:$0xff]
    %v305 = vld [vmem:[#allocation3 + $0x3c0] sm:$0xff]
    %v306 = vld [vmem:[#allocation3 + $0x3c8] sm:$0xff]
    %v307 = vld [vmem:[#allocation3 + $0x3d0] sm:$0xff]
    %v308 = vld [vmem:[#allocation3 + $0x3d8] sm:$0xff]
    %v309 = vld [vmem:[#allocation3 + $0x3e0] sm:$0xff]
    %v310 = vld [vmem:[#allocation3 + $0x3e8] sm:$0xff]
    %v311 = vld [vmem:[#allocation3 + $0x3f0] sm:$0xff]
    %v312 = vld [vmem:[#allocation3 + $0x3f8] sm:$0xff]
    %v313 = vld [vmem:[#allocation3 + $0x400] sm:$0xff]
    %v314 = vld [vmem:[#allocation3 + $0x408] sm:$0xff]
    %v315 = vld [vmem:[#allocation3 + $0x410] sm:$0xff]
    %v316 = vld [vmem:[#allocation3 + $0x418] sm:$0xff]
    %v317 = vld [vmem:[#allocation3 + $0x420] sm:$0xff]
    %v318 = vld [vmem:[#allocation3 + $0x428] sm:$0xff]
    %v319 = vld [vmem:[#allocation3 + $0x430] sm:$0xff]
    %v320 = vld [vmem:[#allocation3 + $0x438] sm:$0xff]
    %v321 = vld [vmem:[#allocation3 + $0x440] sm:$0xff]
    %v322 = vld [vmem:[#allocation3 + $0x448] sm:$0xff]
    %v323 = vld [vmem:[#allocation3 + $0x450] sm:$0xff]
    %v324 = vld [vmem:[#allocation3 + $0x458] sm:$0xff]
    %v325 = vld [vmem:[#allocation3 + $0x460] sm:$0xff]
    %v326 = vld [vmem:[#allocation3 + $0x468] sm:$0xff]
    %v327 = vld [vmem:[#allocation3 + $0x470] sm:$0xff]
    %v328 = vld [vmem:[#allocation3 + $0x478] sm:$0xff]
    %v329 = vld [vmem:[#allocation3 + $0x480] sm:$0xff]
    %v330 = vld [vmem:[#allocation3 + $0x488] sm:$0xff]
    %v331 = vld [vmem:[#allocation3 + $0x490] sm:$0xff]
    %v332 = vld [vmem:[#allocation3 + $0x498] sm:$0xff]
    %v333 = vld [vmem:[#allocation3 + $0x4a0] sm:$0xff]
    %v334 = vld [vmem:[#allocation3 + $0x4a8] sm:$0xff]
    %v335 = vld [vmem:[#allocation3 + $0x4b0] sm:$0xff]
    %v336 = vld [vmem:[#allocation3 + $0x4b8] sm:$0xff]
    %v337 = vld [vmem:[#allocation3 + $0x4c0] sm:$0xff]
    %v338 = vld [vmem:[#allocation3 + $0x4c8] sm:$0xff]
    %v339 = vld [vmem:[#allocation3 + $0x4d0] sm:$0xff]
    %v340 = vld [vmem:[#allocation3 + $0x4d8] sm:$0xff]
    %v341 = vld [vmem:[#allocation3 + $0x4e0] sm:$0xff]
    %v342 = vld [vmem:[#allocation3 + $0x4e8] sm:$0xff]
    %v343 = vld [vmem:[#allocation3 + $0x4f0] sm:$0xff]
    %v344 = vld [vmem:[#allocation3 + $0x4f8] sm:$0xff]
    %v345 = vld [vmem:[#allocation3 + $0x500] sm:$0xff]
    %v346 = vld [vmem:[#allocation3 + $0x508] sm:$0xff]
    %v347 = vld [vmem:[#allocation3 + $0x510] sm:$0xff]
    %v348 = vld [vmem:[#allocation3 + $0x518] sm:$0xff]
    %v349 = vld [vmem:[#allocation3 + $0x520] sm:$0xff]
    %v350 = vld [vmem:[#allocation3 + $0x528] sm:$0xff]
    %v351 = vld [vmem:[#allocation3 + $0x530] sm:$0xff]
    %v352 = vld [vmem:[#allocation3 + $0x538] sm:$0xff]
    %v353 = vld [vmem:[#allocation3 + $0x540] sm:$0xff]
    %v354 = vld [vmem:[#allocation3 + $0x548] sm:$0xff]
    %v355 = vld [vmem:[#allocation3 + $0x550] sm:$0xff]
    %v356 = vld [vmem:[#allocation3 + $0x558] sm:$0xff]
    %v357 = vld [vmem:[#allocation3 + $0x560] sm:$0xff]
    %v358 = vld [vmem:[#allocation3 + $0x568] sm:$0xff]
    %v359 = vld [vmem:[#allocation3 + $0x570] sm:$0xff]
    %v360 = vld [vmem:[#allocation3 + $0x578] sm:$0xff]
    %v361 = vld [vmem:[#allocation3 + $0x580] sm:$0xff]
    %v362 = vld [vmem:[#allocation3 + $0x588] sm:$0xff]
    %v363 = vld [vmem:[#allocation3 + $0x590] sm:$0xff]
    %v364 = vld [vmem:[#allocation3 + $0x598] sm:$0xff]
    %v365 = vld [vmem:[#allocation3 + $0x5a0] sm:$0xff]
    %v366 = vld [vmem:[#allocation3 + $0x5a8] sm:$0xff]
    %v367 = vld [vmem:[#allocation3 + $0x5b0] sm:$0xff]
    %v368 = vld [vmem:[#allocation3 + $0x5b8] sm:$0xff]
    %v369 = vld [vmem:[#allocation3 + $0x5c0] sm:$0xff]
    %v370 = vld [vmem:[#allocation3 + $0x5c8] sm:$0xff]
    %v371 = vld [vmem:[#allocation3 + $0x5d0] sm:$0xff]
    %v372 = vld [vmem:[#allocation3 + $0x5d8] sm:$0xff]
    %v373 = vld [vmem:[#allocation3 + $0x5e0] sm:$0xff]
    %v374 = vld [vmem:[#allocation3 + $0x5e8] sm:$0xff]
    %v375 = vld [vmem:[#allocation3 + $0x5f0] sm:$0xff]
    %v376 = vld [vmem:[#allocation3 + $0x5f8] sm:$0xff]
    %v377 = vld [vmem:[#allocation3 + $0x600] sm:$0xff]
    %v378 = vld [vmem:[#allocation3 + $0x608] sm:$0xff]
    %v379 = vld [vmem:[#allocation3 + $0x610] sm:$0xff]
    %v380 = vld [vmem:[#allocation3 + $0x618] sm:$0xff]
    %v381 = vld [vmem:[#allocation3 + $0x620] sm:$0xff]
    %v382 = vld [vmem:[#allocation3 + $0x628] sm:$0xff]
    %v383 = vld [vmem:[#allocation3 + $0x630] sm:$0xff]
    %v384 = vld [vmem:[#allocation3 + $0x638] sm:$0xff]
    %v385 = vld [vmem:[#allocation3 + $0x640] sm:$0xff]
    %v386 = vld [vmem:[#allocation3 + $0x648] sm:$0xff]
    %v387 = vld [vmem:[#allocation3 + $0x650] sm:$0xff]
    %v388 = vld [vmem:[#allocation3 + $0x658] sm:$0xff]
    %v389 = vld [vmem:[#allocation3 + $0x660] sm:$0xff]
    %v390 = vld [vmem:[#allocation3 + $0x668] sm:$0xff]
    %v391 = vld [vmem:[#allocation3 + $0x670] sm:$0xff]
    %v392 = vld [vmem:[#allocation3 + $0x678] sm:$0xff]
    %v393 = vld [vmem:[#allocation3 + $0x680] sm:$0xff]
    %v394 = vld [vmem:[#allocation3 + $0x688] sm:$0xff]
    %v395 = vld [vmem:[#allocation3 + $0x690] sm:$0xff]
    %v396 = vld [vmem:[#allocation3 + $0x698] sm:$0xff]
    %v397 = vld [vmem:[#allocation3 + $0x6a0] sm:$0xff]
    %v398 = vld [vmem:[#allocation3 + $0x6a8] sm:$0xff]
    %v399 = vld [vmem:[#allocation3 + $0x6b0] sm:$0xff]
    %v400 = vld [vmem:[#allocation3 + $0x6b8] sm:$0xff]
    %v401 = vld [vmem:[#allocation3 + $0x6c0] sm:$0xff]
    %v402 = vld [vmem:[#allocation3 + $0x6c8] sm:$0xff]
    %v403 = vld [vmem:[#allocation3 + $0x6d0] sm:$0xff]
    %v404 = vld [vmem:[#allocation3 + $0x6d8] sm:$0xff]
    %v405 = vld [vmem:[#allocation3 + $0x6e0] sm:$0xff]
    %v406 = vld [vmem:[#allocation3 + $0x6e8] sm:$0xff]
    %v407 = vld [vmem:[#allocation3 + $0x6f0] sm:$0xff]
    %v408 = vld [vmem:[#allocation3 + $0x6f8] sm:$0xff]
    %v409 = vld [vmem:[#allocation3 + $0x700] sm:$0xff]
    %v410 = vld [vmem:[#allocation3 + $0x708] sm:$0xff]
    %v411 = vld [vmem:[#allocation3 + $0x710] sm:$0xff]
    %v412 = vld [vmem:[#allocation3 + $0x718] sm:$0xff]
    %v413 = vld [vmem:[#allocation3 + $0x720] sm:$0xff]
    %v414 = vld [vmem:[#allocation3 + $0x728] sm:$0xff]
    %v415 = vld [vmem:[#allocation3 + $0x730] sm:$0xff]
    %v416 = vld [vmem:[#allocation3 + $0x738] sm:$0xff]
    %v417 = vld [vmem:[#allocation3 + $0x740] sm:$0xff]
    %v418 = vld [vmem:[#allocation3 + $0x748] sm:$0xff]
    %v419 = vld [vmem:[#allocation3 + $0x750] sm:$0xff]
    %v420 = vld [vmem:[#allocation3 + $0x758] sm:$0xff]
    %v421 = vld [vmem:[#allocation3 + $0x760] sm:$0xff]
    %v422 = vld [vmem:[#allocation3 + $0x768] sm:$0xff]
    %v423 = vld [vmem:[#allocation3 + $0x770] sm:$0xff]
    %v424 = vld [vmem:[#allocation3 + $0x778] sm:$0xff]
    %v425 = vld [vmem:[#allocation3 + $0x780] sm:$0xff]
    %v426 = vld [vmem:[#allocation3 + $0x788] sm:$0xff]
    %v427 = vld [vmem:[#allocation3 + $0x790] sm:$0xff]
    %v428 = vld [vmem:[#allocation3 + $0x798] sm:$0xff]
    %v429 = vld [vmem:[#allocation3 + $0x7a0] sm:$0xff]
    %v430 = vld [vmem:[#allocation3 + $0x7a8] sm:$0xff]
    %v431 = vld [vmem:[#allocation3 + $0x7b0] sm:$0xff]
    %v432 = vld [vmem:[#allocation3 + $0x7b8] sm:$0xff]
    %v433 = vld [vmem:[#allocation3 + $0x7c0] sm:$0xff]
    %v434 = vld [vmem:[#allocation3 + $0x7c8] sm:$0xff]
    %v435 = vld [vmem:[#allocation3 + $0x7d0] sm:$0xff]
    %v436 = vld [vmem:[#allocation3 + $0x7d8] sm:$0xff]
    %v437 = vld [vmem:[#allocation3 + $0x7e0] sm:$0xff]
    %v438 = vld [vmem:[#allocation3 + $0x7e8] sm:$0xff]
    %v439 = vld [vmem:[#allocation3 + $0x7f0] sm:$0xff]
    %v440 = vld [vmem:[#allocation3 + $0x7f8] sm:$0xff]
    %v441 = vld [vmem:[%s4] sm:$0xf]
    %v443 = vperm.slane %v441, 0
    %v444 = vperm.slane %v441, 1
    %v445 = vperm.slane %v441, 2
    %v446 = vperm.slane %v441, 3
    %451 = vmatpush.msra.mxu0 %v245
    %452 = vmatpush.msra.mxu0 %v241
    %453 = vmatpush.msra.mxu0 %v237
    %454 = vmatpush.msra.mxu0 %v233
    %455 = vmatpush.msra.mxu0 %v229
    %456 = vmatpush.msra.mxu0 %v225
    %457 = vmatpush.msra.mxu0 %v221
    %458 = vmatpush.msra.mxu0 %v217
    %459 = vmatpush.msra.mxu0 %v213
    %460 = vmatpush.msra.mxu0 %v209
    %461 = vmatpush.msra.mxu0 %v205
    %462 = vmatpush.msra.mxu0 %v201
    %463 = vmatpush.msra.mxu0 %v197
    %464 = vmatpush.msra.mxu0 %v193
    %465 = vmatpush.msra.mxu0 %v189
    %466 = vmatpush.msra.mxu0 %v185
    %467 = vmatmul.f32.gmra.mxu0 %v181
    %v468 = vpop.f32.mrf.mxu0
    %v469 = vadd.f32 %v443, %v468
    %470 = vdwg.mxu0
    %471 = vmatpush.msra.mxu0 %v309
    %472 = vmatpush.msra.mxu0 %v305
    %473 = vmatpush.msra.mxu0 %v301
    %474 = vmatpush.msra.mxu0 %v297
    %475 = vmatpush.msra.mxu0 %v293
    %476 = vmatpush.msra.mxu0 %v289
    %477 = vmatpush.msra.mxu0 %v285
    %478 = vmatpush.msra.mxu0 %v281
    %479 = vmatpush.msra.mxu0 %v277
    %480 = vmatpush.msra.mxu0 %v273
    %481 = vmatpush.msra.mxu0 %v269
    %482 = vmatpush.msra.mxu0 %v265
    %483 = vmatpush.msra.mxu0 %v261
    %484 = vmatpush.msra.mxu0 %v257
    %485 = vmatpush.msra.mxu0 %v253
    %486 = vmatpush.msra.mxu0 %v249
    %487 = vmatmul.f32.gmra.mxu0 %v182
    %v488 = vpop.f32.mrf.mxu0
    %v489 = vadd.f32 %v469, %v488
    %490 = vdwg.mxu0
    %491 = vmatpush.msra.mxu0 %v373
    %492 = vmatpush.msra.mxu0 %v369
    %493 = vmatpush.msra.mxu0 %v365
    %494 = vmatpush.msra.mxu0 %v361
    %495 = vmatpush.msra.mxu0 %v357
    %496 = vmatpush.msra.mxu0 %v353
    %497 = vmatpush.msra.mxu0 %v349
    %498 = vmatpush.msra.mxu0 %v345
    %499 = vmatpush.msra.mxu0 %v341
    %500 = vmatpush.msra.mxu0 %v337
    %501 = vmatpush.msra.mxu0 %v333
    %502 = vmatpush.msra.mxu0 %v329
    %503 = vmatpush.msra.mxu0 %v325
    %504 = vmatpush.msra.mxu0 %v321
    %505 = vmatpush.msra.mxu0 %v317
    %506 = vmatpush.msra.mxu0 %v313
    %507 = vmatmul.f32.gmra.mxu0 %v183
    %v508 = vpop.f32.mrf.mxu0
    %v509 = vadd.f32 %v489, %v508
    %510 = vdwg.mxu0
    %511 = vmatpush.msra.mxu0 %v437
    %512 = vmatpush.msra.mxu0 %v433
    %513 = vmatpush.msra.mxu0 %v429
    %514 = vmatpush.msra.mxu0 %v425
    %515 = vmatpush.msra.mxu0 %v421
    %516 = vmatpush.msra.mxu0 %v417
    %517 = vmatpush.msra.mxu0 %v413
    %518 = vmatpush.msra.mxu0 %v409
    %519 = vmatpush.msra.mxu0 %v405
    %520 = vmatpush.msra.mxu0 %v401
    %521 = vmatpush.msra.mxu0 %v397
    %522 = vmatpush.msra.mxu0 %v393
    %523 = vmatpush.msra.mxu0 %v389
    %524 = vmatpush.msra.mxu0 %v385
    %525 = vmatpush.msra.mxu0 %v381
    %526 = vmatpush.msra.mxu0 %v377
    %527 = vmatmul.f32.gmra.mxu0 %v184
    %v528 = vpop.f32.mrf.mxu0
    %v529 = vadd.f32 %v509, %v528
    %530 = vdwg.mxu0
    %531 = vmatpush.msra.mxu0 %v246
    %532 = vmatpush.msra.mxu0 %v242
    %533 = vmatpush.msra.mxu0 %v238
    %534 = vmatpush.msra.mxu0 %v234
    %535 = vmatpush.msra.mxu0 %v230
    %536 = vmatpush.msra.mxu0 %v226
    %537 = vmatpush.msra.mxu0 %v222
    %538 = vmatpush.msra.mxu0 %v218
    %539 = vmatpush.msra.mxu0 %v214
    %540 = vmatpush.msra.mxu0 %v210
    %541 = vmatpush.msra.mxu0 %v206
    %542 = vmatpush.msra.mxu0 %v202
    %543 = vmatpush.msra.mxu0 %v198
    %544 = vmatpush.msra.mxu0 %v194
    %545 = vmatpush.msra.mxu0 %v190
    %546 = vmatpush.msra.mxu0 %v186
    %547 = vmatmul.f32.gmra.mxu0 %v181
    %v548 = vpop.f32.mrf.mxu0
    %v549 = vadd.f32 %v444, %v548
    %550 = vdwg.mxu0
    %551 = vmatpush.msra.mxu0 %v310
    %552 = vmatpush.msra.mxu0 %v306
    %553 = vmatpush.msra.mxu0 %v302
    %554 = vmatpush.msra.mxu0 %v298
    %555 = vmatpush.msra.mxu0 %v294
    %556 = vmatpush.msra.mxu0 %v290
    %557 = vmatpush.msra.mxu0 %v286
    %558 = vmatpush.msra.mxu0 %v282
    %559 = vmatpush.msra.mxu0 %v278
    %560 = vmatpush.msra.mxu0 %v274
    %561 = vmatpush.msra.mxu0 %v270
    %562 = vmatpush.msra.mxu0 %v266
    %563 = vmatpush.msra.mxu0 %v262
    %564 = vmatpush.msra.mxu0 %v258
    %565 = vmatpush.msra.mxu0 %v254
    %566 = vmatpush.msra.mxu0 %v250
    %567 = vmatmul.f32.gmra.mxu0 %v182
    %v568 = vpop.f32.mrf.mxu0
    %v569 = vadd.f32 %v549, %v568
    %570 = vdwg.mxu0
    %571 = vmatpush.msra.mxu0 %v374
    %572 = vmatpush.msra.mxu0 %v370
    %573 = vmatpush.msra.mxu0 %v366
    %574 = vmatpush.msra.mxu0 %v362
    %575 = vmatpush.msra.mxu0 %v358
    %576 = vmatpush.msra.mxu0 %v354
    %577 = vmatpush.msra.mxu0 %v350
    %578 = vmatpush.msra.mxu0 %v346
    %579 = vmatpush.msra.mxu0 %v342
    %580 = vmatpush.msra.mxu0 %v338
    %581 = vmatpush.msra.mxu0 %v334
    %582 = vmatpush.msra.mxu0 %v330
    %583 = vmatpush.msra.mxu0 %v326
    %584 = vmatpush.msra.mxu0 %v322
    %585 = vmatpush.msra.mxu0 %v318
    %586 = vmatpush.msra.mxu0 %v314
    %587 = vmatmul.f32.gmra.mxu0 %v183
    %v588 = vpop.f32.mrf.mxu0
    %v589 = vadd.f32 %v569, %v588
    %590 = vdwg.mxu0
    %591 = vmatpush.msra.mxu0 %v438
    %592 = vmatpush.msra.mxu0 %v434
    %593 = vmatpush.msra.mxu0 %v430
    %594 = vmatpush.msra.mxu0 %v426
    %595 = vmatpush.msra.mxu0 %v422
    %596 = vmatpush.msra.mxu0 %v418
    %597 = vmatpush.msra.mxu0 %v414
    %598 = vmatpush.msra.mxu0 %v410
    %599 = vmatpush.msra.mxu0 %v406
    %600 = vmatpush.msra.mxu0 %v402
    %601 = vmatpush.msra.mxu0 %v398
    %602 = vmatpush.msra.mxu0 %v394
    %603 = vmatpush.msra.mxu0 %v390
    %604 = vmatpush.msra.mxu0 %v386
    %605 = vmatpush.msra.mxu0 %v382
    %606 = vmatpush.msra.mxu0 %v378
    %607 = vmatmul.f32.gmra.mxu0 %v184
    %v608 = vpop.f32.mrf.mxu0
    %v609 = vadd.f32 %v589, %v608
    %610 = vdwg.mxu0
    %611 = vmatpush.msra.mxu0 %v247
    %612 = vmatpush.msra.mxu0 %v243
    %613 = vmatpush.msra.mxu0 %v239
    %614 = vmatpush.msra.mxu0 %v235
    %615 = vmatpush.msra.mxu0 %v231
    %616 = vmatpush.msra.mxu0 %v227
    %617 = vmatpush.msra.mxu0 %v223
    %618 = vmatpush.msra.mxu0 %v219
    %619 = vmatpush.msra.mxu0 %v215
    %620 = vmatpush.msra.mxu0 %v211
    %621 = vmatpush.msra.mxu0 %v207
    %622 = vmatpush.msra.mxu0 %v203
    %623 = vmatpush.msra.mxu0 %v199
    %624 = vmatpush.msra.mxu0 %v195
    %625 = vmatpush.msra.mxu0 %v191
    %626 = vmatpush.msra.mxu0 %v187
    %627 = vmatmul.f32.gmra.mxu0 %v181
    %v628 = vpop.f32.mrf.mxu0
    %v629 = vadd.f32 %v445, %v628
    %630 = vdwg.mxu0
    %631 = vmatpush.msra.mxu0 %v311
    %632 = vmatpush.msra.mxu0 %v307
    %633 = vmatpush.msra.mxu0 %v303
    %634 = vmatpush.msra.mxu0 %v299
    %635 = vmatpush.msra.mxu0 %v295
    %636 = vmatpush.msra.mxu0 %v291
    %637 = vmatpush.msra.mxu0 %v287
    %638 = vmatpush.msra.mxu0 %v283
    %639 = vmatpush.msra.mxu0 %v279
    %640 = vmatpush.msra.mxu0 %v275
    %641 = vmatpush.msra.mxu0 %v271
    %642 = vmatpush.msra.mxu0 %v267
    %643 = vmatpush.msra.mxu0 %v263
    %644 = vmatpush.msra.mxu0 %v259
    %645 = vmatpush.msra.mxu0 %v255
    %646 = vmatpush.msra.mxu0 %v251
    %647 = vmatmul.f32.gmra.mxu0 %v182
    %v648 = vpop.f32.mrf.mxu0
    %v649 = vadd.f32 %v629, %v648
    %650 = vdwg.mxu0
    %651 = vmatpush.msra.mxu0 %v375
    %652 = vmatpush.msra.mxu0 %v371
    %653 = vmatpush.msra.mxu0 %v367
    %654 = vmatpush.msra.mxu0 %v363
    %655 = vmatpush.msra.mxu0 %v359
    %656 = vmatpush.msra.mxu0 %v355
    %657 = vmatpush.msra.mxu0 %v351
    %658 = vmatpush.msra.mxu0 %v347
    %659 = vmatpush.msra.mxu0 %v343
    %660 = vmatpush.msra.mxu0 %v339
    %661 = vmatpush.msra.mxu0 %v335
    %662 = vmatpush.msra.mxu0 %v331
    %663 = vmatpush.msra.mxu0 %v327
    %664 = vmatpush.msra.mxu0 %v323
    %665 = vmatpush.msra.mxu0 %v319
    %666 = vmatpush.msra.mxu0 %v315
    %667 = vmatmul.f32.gmra.mxu0 %v183
    %v668 = vpop.f32.mrf.mxu0
    %v669 = vadd.f32 %v649, %v668
    %670 = vdwg.mxu0
    %671 = vmatpush.msra.mxu0 %v439
    %672 = vmatpush.msra.mxu0 %v435
    %673 = vmatpush.msra.mxu0 %v431
    %674 = vmatpush.msra.mxu0 %v427
    %675 = vmatpush.msra.mxu0 %v423
    %676 = vmatpush.msra.mxu0 %v419
    %677 = vmatpush.msra.mxu0 %v415
    %678 = vmatpush.msra.mxu0 %v411
    %679 = vmatpush.msra.mxu0 %v407
    %680 = vmatpush.msra.mxu0 %v403
    %681 = vmatpush.msra.mxu0 %v399
    %682 = vmatpush.msra.mxu0 %v395
    %683 = vmatpush.msra.mxu0 %v391
    %684 = vmatpush.msra.mxu0 %v387
    %685 = vmatpush.msra.mxu0 %v383
    %686 = vmatpush.msra.mxu0 %v379
    %687 = vmatmul.f32.gmra.mxu0 %v184
    %v688 = vpop.f32.mrf.mxu0
    %v689 = vadd.f32 %v669, %v688
    %690 = vdwg.mxu0
    %691 = vmatpush.msra.mxu0 %v248
    %692 = vmatpush.msra.mxu0 %v244
    %693 = vmatpush.msra.mxu0 %v240
    %694 = vmatpush.msra.mxu0 %v236
    %695 = vmatpush.msra.mxu0 %v232
    %696 = vmatpush.msra.mxu0 %v228
    %697 = vmatpush.msra.mxu0 %v224
    %698 = vmatpush.msra.mxu0 %v220
    %699 = vmatpush.msra.mxu0 %v216
    %700 = vmatpush.msra.mxu0 %v212
    %701 = vmatpush.msra.mxu0 %v208
    %702 = vmatpush.msra.mxu0 %v204
    %703 = vmatpush.msra.mxu0 %v200
    %704 = vmatpush.msra.mxu0 %v196
    %705 = vmatpush.msra.mxu0 %v192
    %706 = vmatpush.msra.mxu0 %v188
    %707 = vmatmul.f32.gmra.mxu0 %v181
    %v708 = vpop.f32.mrf.mxu0
    %v709 = vadd.f32 %v446, %v708
    %710 = vdwg.mxu0
    %711 = vmatpush.msra.mxu0 %v312
    %712 = vmatpush.msra.mxu0 %v308
    %713 = vmatpush.msra.mxu0 %v304
    %714 = vmatpush.msra.mxu0 %v300
    %715 = vmatpush.msra.mxu0 %v296
    %716 = vmatpush.msra.mxu0 %v292
    %717 = vmatpush.msra.mxu0 %v288
    %718 = vmatpush.msra.mxu0 %v284
    %719 = vmatpush.msra.mxu0 %v280
    %720 = vmatpush.msra.mxu0 %v276
    %721 = vmatpush.msra.mxu0 %v272
    %722 = vmatpush.msra.mxu0 %v268
    %723 = vmatpush.msra.mxu0 %v264
    %724 = vmatpush.msra.mxu0 %v260
    %725 = vmatpush.msra.mxu0 %v256
    %726 = vmatpush.msra.mxu0 %v252
    %727 = vmatmul.f32.gmra.mxu0 %v182
    %v728 = vpop.f32.mrf.mxu0
    %v729 = vadd.f32 %v709, %v728
    %730 = vdwg.mxu0
    %731 = vmatpush.msra.mxu0 %v376
    %732 = vmatpush.msra.mxu0 %v372
    %733 = vmatpush.msra.mxu0 %v368
    %734 = vmatpush.msra.mxu0 %v364
    %735 = vmatpush.msra.mxu0 %v360
    %736 = vmatpush.msra.mxu0 %v356
    %737 = vmatpush.msra.mxu0 %v352
    %738 = vmatpush.msra.mxu0 %v348
    %739 = vmatpush.msra.mxu0 %v344
    %740 = vmatpush.msra.mxu0 %v340
    %741 = vmatpush.msra.mxu0 %v336
    %742 = vmatpush.msra.mxu0 %v332
    %743 = vmatpush.msra.mxu0 %v328
    %744 = vmatpush.msra.mxu0 %v324
    %745 = vmatpush.msra.mxu0 %v320
    %746 = vmatpush.msra.mxu0 %v316
    %747 = vmatmul.f32.gmra.mxu0 %v183
    %v748 = vpop.f32.mrf.mxu0
    %v749 = vadd.f32 %v729, %v748
    %750 = vdwg.mxu0
    %751 = vmatpush.msra.mxu0 %v440
    %752 = vmatpush.msra.mxu0 %v436
    %753 = vmatpush.msra.mxu0 %v432
    %754 = vmatpush.msra.mxu0 %v428
    %755 = vmatpush.msra.mxu0 %v424
    %756 = vmatpush.msra.mxu0 %v420
    %757 = vmatpush.msra.mxu0 %v416
    %758 = vmatpush.msra.mxu0 %v412
    %759 = vmatpush.msra.mxu0 %v408
    %760 = vmatpush.msra.mxu0 %v404
    %761 = vmatpush.msra.mxu0 %v400
    %762 = vmatpush.msra.mxu0 %v396
    %763 = vmatpush.msra.mxu0 %v392
    %764 = vmatpush.msra.mxu0 %v388
    %765 = vmatpush.msra.mxu0 %v384
    %766 = vmatpush.msra.mxu0 %v380
    %767 = vmatmul.f32.gmra.mxu0 %v184
    %v768 = vpop.f32.mrf.mxu0
    %v769 = vadd.f32 %v749, %v768
    %770 = vdwg.mxu0
    %v771 = vmul.f32 %v529, 0.01
    %v772 = vmul.f32 %v609, 0.01
    %v773 = vmul.f32 %v689, 0.01
    %v774 = vmul.f32 %v769, 0.01
    %v775 = vmax.f32 %v529, %v771
    %v776 = vmax.f32 %v609, %v772
    %v777 = vmax.f32 %v689, %v773
    %v778 = vmax.f32 %v769, %v774
    %v779 = vld [vmem:[#allocation5] sm:$0xff]
    %v780 = vld [vmem:[#allocation5 + $0x8] sm:$0xff]
    %v781 = vld [vmem:[#allocation5 + $0x10] sm:$0xff]
    %v782 = vld [vmem:[#allocation5 + $0x18] sm:$0xff]
    %v783 = vld [vmem:[#allocation5 + $0x20] sm:$0xff]
    %v784 = vld [vmem:[#allocation5 + $0x28] sm:$0xff]
    %v785 = vld [vmem:[#allocation5 + $0x30] sm:$0xff]
    %v786 = vld [vmem:[#allocation5 + $0x38] sm:$0xff]
    %v787 = vld [vmem:[#allocation5 + $0x40] sm:$0xff]
    %v788 = vld [vmem:[#allocation5 + $0x48] sm:$0xff]
    %v789 = vld [vmem:[#allocation5 + $0x50] sm:$0xff]
    %v790 = vld [vmem:[#allocation5 + $0x58] sm:$0xff]
    %v791 = vld [vmem:[#allocation5 + $0x60] sm:$0xff]
    %v792 = vld [vmem:[#allocation5 + $0x68] sm:$0xff]
    %v793 = vld [vmem:[#allocation5 + $0x70] sm:$0xff]
    %v794 = vld [vmem:[#allocation5 + $0x78] sm:$0xff]
    %v795 = vld [vmem:[#allocation5 + $0x80] sm:$0xff]
    %v796 = vld [vmem:[#allocation5 + $0x88] sm:$0xff]
    %v797 = vld [vmem:[#allocation5 + $0x90] sm:$0xff]
    %v798 = vld [vmem:[#allocation5 + $0x98] sm:$0xff]
    %v799 = vld [vmem:[#allocation5 + $0xa0] sm:$0xff]
    %v800 = vld [vmem:[#allocation5 + $0xa8] sm:$0xff]
    %v801 = vld [vmem:[#allocation5 + $0xb0] sm:$0xff]
    %v802 = vld [vmem:[#allocation5 + $0xb8] sm:$0xff]
    %v803 = vld [vmem:[#allocation5 + $0xc0] sm:$0xff]
    %v804 = vld [vmem:[#allocation5 + $0xc8] sm:$0xff]
    %v805 = vld [vmem:[#allocation5 + $0xd0] sm:$0xff]
    %v806 = vld [vmem:[#allocation5 + $0xd8] sm:$0xff]
    %v807 = vld [vmem:[#allocation5 + $0xe0] sm:$0xff]
    %v808 = vld [vmem:[#allocation5 + $0xe8] sm:$0xff]
    %v809 = vld [vmem:[#allocation5 + $0xf0] sm:$0xff]
    %v810 = vld [vmem:[#allocation5 + $0xf8] sm:$0xff]
    %v811 = vld [vmem:[#allocation5 + $0x100] sm:$0xff]
    %v812 = vld [vmem:[#allocation5 + $0x108] sm:$0xff]
    %v813 = vld [vmem:[#allocation5 + $0x110] sm:$0xff]
    %v814 = vld [vmem:[#allocation5 + $0x118] sm:$0xff]
    %v815 = vld [vmem:[#allocation5 + $0x120] sm:$0xff]
    %v816 = vld [vmem:[#allocation5 + $0x128] sm:$0xff]
    %v817 = vld [vmem:[#allocation5 + $0x130] sm:$0xff]
    %v818 = vld [vmem:[#allocation5 + $0x138] sm:$0xff]
    %v819 = vld [vmem:[#allocation5 + $0x140] sm:$0xff]
    %v820 = vld [vmem:[#allocation5 + $0x148] sm:$0xff]
    %v821 = vld [vmem:[#allocation5 + $0x150] sm:$0xff]
    %v822 = vld [vmem:[#allocation5 + $0x158] sm:$0xff]
    %v823 = vld [vmem:[#allocation5 + $0x160] sm:$0xff]
    %v824 = vld [vmem:[#allocation5 + $0x168] sm:$0xff]
    %v825 = vld [vmem:[#allocation5 + $0x170] sm:$0xff]
    %v826 = vld [vmem:[#allocation5 + $0x178] sm:$0xff]
    %v827 = vld [vmem:[#allocation5 + $0x180] sm:$0xff]
    %v828 = vld [vmem:[#allocation5 + $0x188] sm:$0xff]
    %v829 = vld [vmem:[#allocation5 + $0x190] sm:$0xff]
    %v830 = vld [vmem:[#allocation5 + $0x198] sm:$0xff]
    %v831 = vld [vmem:[#allocation5 + $0x1a0] sm:$0xff]
    %v832 = vld [vmem:[#allocation5 + $0x1a8] sm:$0xff]
    %v833 = vld [vmem:[#allocation5 + $0x1b0] sm:$0xff]
    %v834 = vld [vmem:[#allocation5 + $0x1b8] sm:$0xff]
    %v835 = vld [vmem:[#allocation5 + $0x1c0] sm:$0xff]
    %v836 = vld [vmem:[#allocation5 + $0x1c8] sm:$0xff]
    %v837 = vld [vmem:[#allocation5 + $0x1d0] sm:$0xff]
    %v838 = vld [vmem:[#allocation5 + $0x1d8] sm:$0xff]
    %v839 = vld [vmem:[#allocation5 + $0x1e0] sm:$0xff]
    %v840 = vld [vmem:[#allocation5 + $0x1e8] sm:$0xff]
    %v841 = vld [vmem:[#allocation5 + $0x1f0] sm:$0xff]
    %v842 = vld [vmem:[#allocation5 + $0x1f8] sm:$0xff]
    %v843 = vld [vmem:[#allocation5 + $0x200] sm:$0xff]
    %v844 = vld [vmem:[#allocation5 + $0x208] sm:$0xff]
    %v845 = vld [vmem:[#allocation5 + $0x210] sm:$0xff]
    %v846 = vld [vmem:[#allocation5 + $0x218] sm:$0xff]
    %v847 = vld [vmem:[#allocation5 + $0x220] sm:$0xff]
    %v848 = vld [vmem:[#allocation5 + $0x228] sm:$0xff]
    %v849 = vld [vmem:[#allocation5 + $0x230] sm:$0xff]
    %v850 = vld [vmem:[#allocation5 + $0x238] sm:$0xff]
    %v851 = vld [vmem:[#allocation5 + $0x240] sm:$0xff]
    %v852 = vld [vmem:[#allocation5 + $0x248] sm:$0xff]
    %v853 = vld [vmem:[#allocation5 + $0x250] sm:$0xff]
    %v854 = vld [vmem:[#allocation5 + $0x258] sm:$0xff]
    %v855 = vld [vmem:[#allocation5 + $0x260] sm:$0xff]
    %v856 = vld [vmem:[#allocation5 + $0x268] sm:$0xff]
    %v857 = vld [vmem:[#allocation5 + $0x270] sm:$0xff]
    %v858 = vld [vmem:[#allocation5 + $0x278] sm:$0xff]
    %v859 = vld [vmem:[#allocation5 + $0x280] sm:$0xff]
    %v860 = vld [vmem:[#allocation5 + $0x288] sm:$0xff]
    %v861 = vld [vmem:[#allocation5 + $0x290] sm:$0xff]
    %v862 = vld [vmem:[#allocation5 + $0x298] sm:$0xff]
    %v863 = vld [vmem:[#allocation5 + $0x2a0] sm:$0xff]
    %v864 = vld [vmem:[#allocation5 + $0x2a8] sm:$0xff]
    %v865 = vld [vmem:[#allocation5 + $0x2b0] sm:$0xff]
    %v866 = vld [vmem:[#allocation5 + $0x2b8] sm:$0xff]
    %v867 = vld [vmem:[#allocation5 + $0x2c0] sm:$0xff]
    %v868 = vld [vmem:[#allocation5 + $0x2c8] sm:$0xff]
    %v869 = vld [vmem:[#allocation5 + $0x2d0] sm:$0xff]
    %v870 = vld [vmem:[#allocation5 + $0x2d8] sm:$0xff]
    %v871 = vld [vmem:[#allocation5 + $0x2e0] sm:$0xff]
    %v872 = vld [vmem:[#allocation5 + $0x2e8] sm:$0xff]
    %v873 = vld [vmem:[#allocation5 + $0x2f0] sm:$0xff]
    %v874 = vld [vmem:[#allocation5 + $0x2f8] sm:$0xff]
    %v875 = vld [vmem:[#allocation5 + $0x300] sm:$0xff]
    %v876 = vld [vmem:[#allocation5 + $0x308] sm:$0xff]
    %v877 = vld [vmem:[#allocation5 + $0x310] sm:$0xff]
    %v878 = vld [vmem:[#allocation5 + $0x318] sm:$0xff]
    %v879 = vld [vmem:[#allocation5 + $0x320] sm:$0xff]
    %v880 = vld [vmem:[#allocation5 + $0x328] sm:$0xff]
    %v881 = vld [vmem:[#allocation5 + $0x330] sm:$0xff]
    %v882 = vld [vmem:[#allocation5 + $0x338] sm:$0xff]
    %v883 = vld [vmem:[#allocation5 + $0x340] sm:$0xff]
    %v884 = vld [vmem:[#allocation5 + $0x348] sm:$0xff]
    %v885 = vld [vmem:[#allocation5 + $0x350] sm:$0xff]
    %v886 = vld [vmem:[#allocation5 + $0x358] sm:$0xff]
    %v887 = vld [vmem:[#allocation5 + $0x360] sm:$0xff]
    %v888 = vld [vmem:[#allocation5 + $0x368] sm:$0xff]
    %v889 = vld [vmem:[#allocation5 + $0x370] sm:$0xff]
    %v890 = vld [vmem:[#allocation5 + $0x378] sm:$0xff]
    %v891 = vld [vmem:[#allocation5 + $0x380] sm:$0xff]
    %v892 = vld [vmem:[#allocation5 + $0x388] sm:$0xff]
    %v893 = vld [vmem:[#allocation5 + $0x390] sm:$0xff]
    %v894 = vld [vmem:[#allocation5 + $0x398] sm:$0xff]
    %v895 = vld [vmem:[#allocation5 + $0x3a0] sm:$0xff]
    %v896 = vld [vmem:[#allocation5 + $0x3a8] sm:$0xff]
    %v897 = vld [vmem:[#allocation5 + $0x3b0] sm:$0xff]
    %v898 = vld [vmem:[#allocation5 + $0x3b8] sm:$0xff]
    %v899 = vld [vmem:[#allocation5 + $0x3c0] sm:$0xff]
    %v900 = vld [vmem:[#allocation5 + $0x3c8] sm:$0xff]
    %v901 = vld [vmem:[#allocation5 + $0x3d0] sm:$0xff]
    %v902 = vld [vmem:[#allocation5 + $0x3d8] sm:$0xff]
    %v903 = vld [vmem:[#allocation5 + $0x3e0] sm:$0xff]
    %v904 = vld [vmem:[#allocation5 + $0x3e8] sm:$0xff]
    %v905 = vld [vmem:[#allocation5 + $0x3f0] sm:$0xff]
    %v906 = vld [vmem:[#allocation5 + $0x3f8] sm:$0xff]
    %v907 = vld [vmem:[#allocation5 + $0x400] sm:$0xff]
    %v908 = vld [vmem:[#allocation5 + $0x408] sm:$0xff]
    %v909 = vld [vmem:[#allocation5 + $0x410] sm:$0xff]
    %v910 = vld [vmem:[#allocation5 + $0x418] sm:$0xff]
    %v911 = vld [vmem:[#allocation5 + $0x420] sm:$0xff]
    %v912 = vld [vmem:[#allocation5 + $0x428] sm:$0xff]
    %v913 = vld [vmem:[#allocation5 + $0x430] sm:$0xff]
    %v914 = vld [vmem:[#allocation5 + $0x438] sm:$0xff]
    %v915 = vld [vmem:[#allocation5 + $0x440] sm:$0xff]
    %v916 = vld [vmem:[#allocation5 + $0x448] sm:$0xff]
    %v917 = vld [vmem:[#allocation5 + $0x450] sm:$0xff]
    %v918 = vld [vmem:[#allocation5 + $0x458] sm:$0xff]
    %v919 = vld [vmem:[#allocation5 + $0x460] sm:$0xff]
    %v920 = vld [vmem:[#allocation5 + $0x468] sm:$0xff]
    %v921 = vld [vmem:[#allocation5 + $0x470] sm:$0xff]
    %v922 = vld [vmem:[#allocation5 + $0x478] sm:$0xff]
    %v923 = vld [vmem:[#allocation5 + $0x480] sm:$0xff]
    %v924 = vld [vmem:[#allocation5 + $0x488] sm:$0xff]
    %v925 = vld [vmem:[#allocation5 + $0x490] sm:$0xff]
    %v926 = vld [vmem:[#allocation5 + $0x498] sm:$0xff]
    %v927 = vld [vmem:[#allocation5 + $0x4a0] sm:$0xff]
    %v928 = vld [vmem:[#allocation5 + $0x4a8] sm:$0xff]
    %v929 = vld [vmem:[#allocation5 + $0x4b0] sm:$0xff]
    %v930 = vld [vmem:[#allocation5 + $0x4b8] sm:$0xff]
    %v931 = vld [vmem:[#allocation5 + $0x4c0] sm:$0xff]
    %v932 = vld [vmem:[#allocation5 + $0x4c8] sm:$0xff]
    %v933 = vld [vmem:[#allocation5 + $0x4d0] sm:$0xff]
    %v934 = vld [vmem:[#allocation5 + $0x4d8] sm:$0xff]
    %v935 = vld [vmem:[#allocation5 + $0x4e0] sm:$0xff]
    %v936 = vld [vmem:[#allocation5 + $0x4e8] sm:$0xff]
    %v937 = vld [vmem:[#allocation5 + $0x4f0] sm:$0xff]
    %v938 = vld [vmem:[#allocation5 + $0x4f8] sm:$0xff]
    %v939 = vld [vmem:[#allocation5 + $0x500] sm:$0xff]
    %v940 = vld [vmem:[#allocation5 + $0x508] sm:$0xff]
    %v941 = vld [vmem:[#allocation5 + $0x510] sm:$0xff]
    %v942 = vld [vmem:[#allocation5 + $0x518] sm:$0xff]
    %v943 = vld [vmem:[#allocation5 + $0x520] sm:$0xff]
    %v944 = vld [vmem:[#allocation5 + $0x528] sm:$0xff]
    %v945 = vld [vmem:[#allocation5 + $0x530] sm:$0xff]
    %v946 = vld [vmem:[#allocation5 + $0x538] sm:$0xff]
    %v947 = vld [vmem:[#allocation5 + $0x540] sm:$0xff]
    %v948 = vld [vmem:[#allocation5 + $0x548] sm:$0xff]
    %v949 = vld [vmem:[#allocation5 + $0x550] sm:$0xff]
    %v950 = vld [vmem:[#allocation5 + $0x558] sm:$0xff]
    %v951 = vld [vmem:[#allocation5 + $0x560] sm:$0xff]
    %v952 = vld [vmem:[#allocation5 + $0x568] sm:$0xff]
    %v953 = vld [vmem:[#allocation5 + $0x570] sm:$0xff]
    %v954 = vld [vmem:[#allocation5 + $0x578] sm:$0xff]
    %v955 = vld [vmem:[#allocation5 + $0x580] sm:$0xff]
    %v956 = vld [vmem:[#allocation5 + $0x588] sm:$0xff]
    %v957 = vld [vmem:[#allocation5 + $0x590] sm:$0xff]
    %v958 = vld [vmem:[#allocation5 + $0x598] sm:$0xff]
    %v959 = vld [vmem:[#allocation5 + $0x5a0] sm:$0xff]
    %v960 = vld [vmem:[#allocation5 + $0x5a8] sm:$0xff]
    %v961 = vld [vmem:[#allocation5 + $0x5b0] sm:$0xff]
    %v962 = vld [vmem:[#allocation5 + $0x5b8] sm:$0xff]
    %v963 = vld [vmem:[#allocation5 + $0x5c0] sm:$0xff]
    %v964 = vld [vmem:[#allocation5 + $0x5c8] sm:$0xff]
    %v965 = vld [vmem:[#allocation5 + $0x5d0] sm:$0xff]
    %v966 = vld [vmem:[#allocation5 + $0x5d8] sm:$0xff]
    %v967 = vld [vmem:[#allocation5 + $0x5e0] sm:$0xff]
    %v968 = vld [vmem:[#allocation5 + $0x5e8] sm:$0xff]
    %v969 = vld [vmem:[#allocation5 + $0x5f0] sm:$0xff]
    %v970 = vld [vmem:[#allocation5 + $0x5f8] sm:$0xff]
    %v971 = vld [vmem:[#allocation5 + $0x600] sm:$0xff]
    %v972 = vld [vmem:[#allocation5 + $0x608] sm:$0xff]
    %v973 = vld [vmem:[#allocation5 + $0x610] sm:$0xff]
    %v974 = vld [vmem:[#allocation5 + $0x618] sm:$0xff]
    %v975 = vld [vmem:[#allocation5 + $0x620] sm:$0xff]
    %v976 = vld [vmem:[#allocation5 + $0x628] sm:$0xff]
    %v977 = vld [vmem:[#allocation5 + $0x630] sm:$0xff]
    %v978 = vld [vmem:[#allocation5 + $0x638] sm:$0xff]
    %v979 = vld [vmem:[#allocation5 + $0x640] sm:$0xff]
    %v980 = vld [vmem:[#allocation5 + $0x648] sm:$0xff]
    %v981 = vld [vmem:[#allocation5 + $0x650] sm:$0xff]
    %v982 = vld [vmem:[#allocation5 + $0x658] sm:$0xff]
    %v983 = vld [vmem:[#allocation5 + $0x660] sm:$0xff]
    %v984 = vld [vmem:[#allocation5 + $0x668] sm:$0xff]
    %v985 = vld [vmem:[#allocation5 + $0x670] sm:$0xff]
    %v986 = vld [vmem:[#allocation5 + $0x678] sm:$0xff]
    %v987 = vld [vmem:[#allocation5 + $0x680] sm:$0xff]
    %v988 = vld [vmem:[#allocation5 + $0x688] sm:$0xff]
    %v989 = vld [vmem:[#allocation5 + $0x690] sm:$0xff]
    %v990 = vld [vmem:[#allocation5 + $0x698] sm:$0xff]
    %v991 = vld [vmem:[#allocation5 + $0x6a0] sm:$0xff]
    %v992 = vld [vmem:[#allocation5 + $0x6a8] sm:$0xff]
    %v993 = vld [vmem:[#allocation5 + $0x6b0] sm:$0xff]
    %v994 = vld [vmem:[#allocation5 + $0x6b8] sm:$0xff]
    %v995 = vld [vmem:[#allocation5 + $0x6c0] sm:$0xff]
    %v996 = vld [vmem:[#allocation5 + $0x6c8] sm:$0xff]
    %v997 = vld [vmem:[#allocation5 + $0x6d0] sm:$0xff]
    %v998 = vld [vmem:[#allocation5 + $0x6d8] sm:$0xff]
    %v999 = vld [vmem:[#allocation5 + $0x6e0] sm:$0xff]
    %v1000 = vld [vmem:[#allocation5 + $0x6e8] sm:$0xff]
    %v1001 = vld [vmem:[#allocation5 + $0x6f0] sm:$0xff]
    %v1002 = vld [vmem:[#allocation5 + $0x6f8] sm:$0xff]
    %v1003 = vld [vmem:[#allocation5 + $0x700] sm:$0xff]
    %v1004 = vld [vmem:[#allocation5 + $0x708] sm:$0xff]
    %v1005 = vld [vmem:[#allocation5 + $0x710] sm:$0xff]
    %v1006 = vld [vmem:[#allocation5 + $0x718] sm:$0xff]
    %v1007 = vld [vmem:[#allocation5 + $0x720] sm:$0xff]
    %v1008 = vld [vmem:[#allocation5 + $0x728] sm:$0xff]
    %v1009 = vld [vmem:[#allocation5 + $0x730] sm:$0xff]
    %v1010 = vld [vmem:[#allocation5 + $0x738] sm:$0xff]
    %v1011 = vld [vmem:[#allocation5 + $0x740] sm:$0xff]
    %v1012 = vld [vmem:[#allocation5 + $0x748] sm:$0xff]
    %v1013 = vld [vmem:[#allocation5 + $0x750] sm:$0xff]
    %v1014 = vld [vmem:[#allocation5 + $0x758] sm:$0xff]
    %v1015 = vld [vmem:[#allocation5 + $0x760] sm:$0xff]
    %v1016 = vld [vmem:[#allocation5 + $0x768] sm:$0xff]
    %v1017 = vld [vmem:[#allocation5 + $0x770] sm:$0xff]
    %v1018 = vld [vmem:[#allocation5 + $0x778] sm:$0xff]
    %v1019 = vld [vmem:[#allocation5 + $0x780] sm:$0xff]
    %v1020 = vld [vmem:[#allocation5 + $0x788] sm:$0xff]
    %v1021 = vld [vmem:[#allocation5 + $0x790] sm:$0xff]
    %v1022 = vld [vmem:[#allocation5 + $0x798] sm:$0xff]
    %v1023 = vld [vmem:[#allocation5 + $0x7a0] sm:$0xff]
    %v1024 = vld [vmem:[#allocation5 + $0x7a8] sm:$0xff]
    %v1025 = vld [vmem:[#allocation5 + $0x7b0] sm:$0xff]
    %v1026 = vld [vmem:[#allocation5 + $0x7b8] sm:$0xff]
    %v1027 = vld [vmem:[#allocation5 + $0x7c0] sm:$0xff]
    %v1028 = vld [vmem:[#allocation5 + $0x7c8] sm:$0xff]
    %v1029 = vld [vmem:[#allocation5 + $0x7d0] sm:$0xff]
    %v1030 = vld [vmem:[#allocation5 + $0x7d8] sm:$0xff]
    %v1031 = vld [vmem:[#allocation5 + $0x7e0] sm:$0xff]
    %v1032 = vld [vmem:[#allocation5 + $0x7e8] sm:$0xff]
    %v1033 = vld [vmem:[#allocation5 + $0x7f0] sm:$0xff]
    %v1034 = vld [vmem:[#allocation5 + $0x7f8] sm:$0xff]
    %v1035 = vld [vmem:[%s6] sm:$0xf]
    %v1037 = vperm.slane %v1035, 0
    %v1038 = vperm.slane %v1035, 1
    %v1039 = vperm.slane %v1035, 2
    %v1040 = vperm.slane %v1035, 3
    %1045 = vmatpush.msra.mxu0 %v839
    %1046 = vmatpush.msra.mxu0 %v835
    %1047 = vmatpush.msra.mxu0 %v831
    %1048 = vmatpush.msra.mxu0 %v827
    %1049 = vmatpush.msra.mxu0 %v823
    %1050 = vmatpush.msra.mxu0 %v819
    %1051 = vmatpush.msra.mxu0 %v815
    %1052 = vmatpush.msra.mxu0 %v811
    %1053 = vmatpush.msra.mxu0 %v807
    %1054 = vmatpush.msra.mxu0 %v803
    %1055 = vmatpush.msra.mxu0 %v799
    %1056 = vmatpush.msra.mxu0 %v795
    %1057 = vmatpush.msra.mxu0 %v791
    %1058 = vmatpush.msra.mxu0 %v787
    %1059 = vmatpush.msra.mxu0 %v783
    %1060 = vmatpush.msra.mxu0 %v779
    %1061 = vmatmul.f32.gmra.mxu0 %v775
    %v1062 = vpop.f32.mrf.mxu0
    %v1063 = vadd.f32 %v1037, %v1062
    %1064 = vdwg.mxu0
    %1065 = vmatpush.msra.mxu0 %v903
    %1066 = vmatpush.msra.mxu0 %v899
    %1067 = vmatpush.msra.mxu0 %v895
    %1068 = vmatpush.msra.mxu0 %v891
    %1069 = vmatpush.msra.mxu0 %v887
    %1070 = vmatpush.msra.mxu0 %v883
    %1071 = vmatpush.msra.mxu0 %v879
    %1072 = vmatpush.msra.mxu0 %v875
    %1073 = vmatpush.msra.mxu0 %v871
    %1074 = vmatpush.msra.mxu0 %v867
    %1075 = vmatpush.msra.mxu0 %v863
    %1076 = vmatpush.msra.mxu0 %v859
    %1077 = vmatpush.msra.mxu0 %v855
    %1078 = vmatpush.msra.mxu0 %v851
    %1079 = vmatpush.msra.mxu0 %v847
    %1080 = vmatpush.msra.mxu0 %v843
    %1081 = vmatmul.f32.gmra.mxu0 %v776
    %v1082 = vpop.f32.mrf.mxu0
    %v1083 = vadd.f32 %v1063, %v1082
    %1084 = vdwg.mxu0
    %1085 = vmatpush.msra.mxu0 %v967
    %1086 = vmatpush.msra.mxu0 %v963
    %1087 = vmatpush.msra.mxu0 %v959
    %1088 = vmatpush.msra.mxu0 %v955
    %1089 = vmatpush.msra.mxu0 %v951
    %1090 = vmatpush.msra.mxu0 %v947
    %1091 = vmatpush.msra.mxu0 %v943
    %1092 = vmatpush.msra.mxu0 %v939
    %1093 = vmatpush.msra.mxu0 %v935
    %1094 = vmatpush.msra.mxu0 %v931
    %1095 = vmatpush.msra.mxu0 %v927
    %1096 = vmatpush.msra.mxu0 %v923
    %1097 = vmatpush.msra.mxu0 %v919
    %1098 = vmatpush.msra.mxu0 %v915
    %1099 = vmatpush.msra.mxu0 %v911
    %1100 = vmatpush.msra.mxu0 %v907
    %1101 = vmatmul.f32.gmra.mxu0 %v777
    %v1102 = vpop.f32.mrf.mxu0
    %v1103 = vadd.f32 %v1083, %v1102
    %1104 = vdwg.mxu0
    %1105 = vmatpush.msra.mxu0 %v1031
    %1106 = vmatpush.msra.mxu0 %v1027
    %1107 = vmatpush.msra.mxu0 %v1023
    %1108 = vmatpush.msra.mxu0 %v1019
    %1109 = vmatpush.msra.mxu0 %v1015
    %1110 = vmatpush.msra.mxu0 %v1011
    %1111 = vmatpush.msra.mxu0 %v1007
    %1112 = vmatpush.msra.mxu0 %v1003
    %1113 = vmatpush.msra.mxu0 %v999
    %1114 = vmatpush.msra.mxu0 %v995
    %1115 = vmatpush.msra.mxu0 %v991
    %1116 = vmatpush.msra.mxu0 %v987
    %1117 = vmatpush.msra.mxu0 %v983
    %1118 = vmatpush.msra.mxu0 %v979
    %1119 = vmatpush.msra.mxu0 %v975
    %1120 = vmatpush.msra.mxu0 %v971
    %1121 = vmatmul.f32.gmra.mxu0 %v778
    %v1122 = vpop.f32.mrf.mxu0
    %v1123 = vadd.f32 %v1103, %v1122
    %1124 = vdwg.mxu0
    %1125 = vmatpush.msra.mxu0 %v840
    %1126 = vmatpush.msra.mxu0 %v836
    %1127 = vmatpush.msra.mxu0 %v832
    %1128 = vmatpush.msra.mxu0 %v828
    %1129 = vmatpush.msra.mxu0 %v824
    %1130 = vmatpush.msra.mxu0 %v820
    %1131 = vmatpush.msra.mxu0 %v816
    %1132 = vmatpush.msra.mxu0 %v812
    %1133 = vmatpush.msra.mxu0 %v808
    %1134 = vmatpush.msra.mxu0 %v804
    %1135 = vmatpush.msra.mxu0 %v800
    %1136 = vmatpush.msra.mxu0 %v796
    %1137 = vmatpush.msra.mxu0 %v792
    %1138 = vmatpush.msra.mxu0 %v788
    %1139 = vmatpush.msra.mxu0 %v784
    %1140 = vmatpush.msra.mxu0 %v780
    %1141 = vmatmul.f32.gmra.mxu0 %v775
    %v1142 = vpop.f32.mrf.mxu0
    %v1143 = vadd.f32 %v1038, %v1142
    %1144 = vdwg.mxu0
    %1145 = vmatpush.msra.mxu0 %v904
    %1146 = vmatpush.msra.mxu0 %v900
    %1147 = vmatpush.msra.mxu0 %v896
    %1148 = vmatpush.msra.mxu0 %v892
    %1149 = vmatpush.msra.mxu0 %v888
    %1150 = vmatpush.msra.mxu0 %v884
    %1151 = vmatpush.msra.mxu0 %v880
    %1152 = vmatpush.msra.mxu0 %v876
    %1153 = vmatpush.msra.mxu0 %v872
    %1154 = vmatpush.msra.mxu0 %v868
    %1155 = vmatpush.msra.mxu0 %v864
    %1156 = vmatpush.msra.mxu0 %v860
    %1157 = vmatpush.msra.mxu0 %v856
    %1158 = vmatpush.msra.mxu0 %v852
    %1159 = vmatpush.msra.mxu0 %v848
    %1160 = vmatpush.msra.mxu0 %v844
    %1161 = vmatmul.f32.gmra.mxu0 %v776
    %v1162 = vpop.f32.mrf.mxu0
    %v1163 = vadd.f32 %v1143, %v1162
    %1164 = vdwg.mxu0
    %1165 = vmatpush.msra.mxu0 %v968
    %1166 = vmatpush.msra.mxu0 %v964
    %1167 = vmatpush.msra.mxu0 %v960
    %1168 = vmatpush.msra.mxu0 %v956
    %1169 = vmatpush.msra.mxu0 %v952
    %1170 = vmatpush.msra.mxu0 %v948
    %1171 = vmatpush.msra.mxu0 %v944
    %1172 = vmatpush.msra.mxu0 %v940
    %1173 = vmatpush.msra.mxu0 %v936
    %1174 = vmatpush.msra.mxu0 %v932
    %1175 = vmatpush.msra.mxu0 %v928
    %1176 = vmatpush.msra.mxu0 %v924
    %1177 = vmatpush.msra.mxu0 %v920
    %1178 = vmatpush.msra.mxu0 %v916
    %1179 = vmatpush.msra.mxu0 %v912
    %1180 = vmatpush.msra.mxu0 %v908
    %1181 = vmatmul.f32.gmra.mxu0 %v777
    %v1182 = vpop.f32.mrf.mxu0
    %v1183 = vadd.f32 %v1163, %v1182
    %1184 = vdwg.mxu0
    %1185 = vmatpush.msra.mxu0 %v1032
    %1186 = vmatpush.msra.mxu0 %v1028
    %1187 = vmatpush.msra.mxu0 %v1024
    %1188 = vmatpush.msra.mxu0 %v1020
    %1189 = vmatpush.msra.mxu0 %v1016
    %1190 = vmatpush.msra.mxu0 %v1012
    %1191 = vmatpush.msra.mxu0 %v1008
    %1192 = vmatpush.msra.mxu0 %v1004
    %1193 = vmatpush.msra.mxu0 %v1000
    %1194 = vmatpush.msra.mxu0 %v996
    %1195 = vmatpush.msra.mxu0 %v992
    %1196 = vmatpush.msra.mxu0 %v988
    %1197 = vmatpush.msra.mxu0 %v984
    %1198 = vmatpush.msra.mxu0 %v980
    %1199 = vmatpush.msra.mxu0 %v976
    %1200 = vmatpush.msra.mxu0 %v972
    %1201 = vmatmul.f32.gmra.mxu0 %v778
    %v1202 = vpop.f32.mrf.mxu0
    %v1203 = vadd.f32 %v1183, %v1202
    %1204 = vdwg.mxu0
    %1205 = vmatpush.msra.mxu0 %v841
    %1206 = vmatpush.msra.mxu0 %v837
    %1207 = vmatpush.msra.mxu0 %v833
    %1208 = vmatpush.msra.mxu0 %v829
    %1209 = vmatpush.msra.mxu0 %v825
    %1210 = vmatpush.msra.mxu0 %v821
    %1211 = vmatpush.msra.mxu0 %v817
    %1212 = vmatpush.msra.mxu0 %v813
    %1213 = vmatpush.msra.mxu0 %v809
    %1214 = vmatpush.msra.mxu0 %v805
    %1215 = vmatpush.msra.mxu0 %v801
    %1216 = vmatpush.msra.mxu0 %v797
    %1217 = vmatpush.msra.mxu0 %v793
    %1218 = vmatpush.msra.mxu0 %v789
    %1219 = vmatpush.msra.mxu0 %v785
    %1220 = vmatpush.msra.mxu0 %v781
    %1221 = vmatmul.f32.gmra.mxu0 %v775
    %v1222 = vpop.f32.mrf.mxu0
    %v1223 = vadd.f32 %v1039, %v1222
    %1224 = vdwg.mxu0
    %1225 = vmatpush.msra.mxu0 %v905
    %1226 = vmatpush.msra.mxu0 %v901
    %1227 = vmatpush.msra.mxu0 %v897
    %1228 = vmatpush.msra.mxu0 %v893
    %1229 = vmatpush.msra.mxu0 %v889
    %1230 = vmatpush.msra.mxu0 %v885
    %1231 = vmatpush.msra.mxu0 %v881
    %1232 = vmatpush.msra.mxu0 %v877
    %1233 = vmatpush.msra.mxu0 %v873
    %1234 = vmatpush.msra.mxu0 %v869
    %1235 = vmatpush.msra.mxu0 %v865
    %1236 = vmatpush.msra.mxu0 %v861
    %1237 = vmatpush.msra.mxu0 %v857
    %1238 = vmatpush.msra.mxu0 %v853
    %1239 = vmatpush.msra.mxu0 %v849
    %1240 = vmatpush.msra.mxu0 %v845
    %1241 = vmatmul.f32.gmra.mxu0 %v776
    %v1242 = vpop.f32.mrf.mxu0
    %v1243 = vadd.f32 %v1223, %v1242
    %1244 = vdwg.mxu0
    %1245 = vmatpush.msra.mxu0 %v969
    %1246 = vmatpush.msra.mxu0 %v965
    %1247 = vmatpush.msra.mxu0 %v961
    %1248 = vmatpush.msra.mxu0 %v957
    %1249 = vmatpush.msra.mxu0 %v953
    %1250 = vmatpush.msra.mxu0 %v949
    %1251 = vmatpush.msra.mxu0 %v945
    %1252 = vmatpush.msra.mxu0 %v941
    %1253 = vmatpush.msra.mxu0 %v937
    %1254 = vmatpush.msra.mxu0 %v933
    %1255 = vmatpush.msra.mxu0 %v929
    %1256 = vmatpush.msra.mxu0 %v925
    %1257 = vmatpush.msra.mxu0 %v921
    %1258 = vmatpush.msra.mxu0 %v917
    %1259 = vmatpush.msra.mxu0 %v913
    %1260 = vmatpush.msra.mxu0 %v909
    %1261 = vmatmul.f32.gmra.mxu0 %v777
    %v1262 = vpop.f32.mrf.mxu0
    %v1263 = vadd.f32 %v1243, %v1262
    %1264 = vdwg.mxu0
    %1265 = vmatpush.msra.mxu0 %v1033
    %1266 = vmatpush.msra.mxu0 %v1029
    %1267 = vmatpush.msra.mxu0 %v1025
    %1268 = vmatpush.msra.mxu0 %v1021
    %1269 = vmatpush.msra.mxu0 %v1017
    %1270 = vmatpush.msra.mxu0 %v1013
    %1271 = vmatpush.msra.mxu0 %v1009
    %1272 = vmatpush.msra.mxu0 %v1005
    %1273 = vmatpush.msra.mxu0 %v1001
    %1274 = vmatpush.msra.mxu0 %v997
    %1275 = vmatpush.msra.mxu0 %v993
    %1276 = vmatpush.msra.mxu0 %v989
    %1277 = vmatpush.msra.mxu0 %v985
    %1278 = vmatpush.msra.mxu0 %v981
    %1279 = vmatpush.msra.mxu0 %v977
    %1280 = vmatpush.msra.mxu0 %v973
    %1281 = vmatmul.f32.gmra.mxu0 %v778
    %v1282 = vpop.f32.mrf.mxu0
    %v1283 = vadd.f32 %v1263, %v1282
    %1284 = vdwg.mxu0
    %1285 = vmatpush.msra.mxu0 %v842
    %1286 = vmatpush.msra.mxu0 %v838
    %1287 = vmatpush.msra.mxu0 %v834
    %1288 = vmatpush.msra.mxu0 %v830
    %1289 = vmatpush.msra.mxu0 %v826
    %1290 = vmatpush.msra.mxu0 %v822
    %1291 = vmatpush.msra.mxu0 %v818
    %1292 = vmatpush.msra.mxu0 %v814
    %1293 = vmatpush.msra.mxu0 %v810
    %1294 = vmatpush.msra.mxu0 %v806
    %1295 = vmatpush.msra.mxu0 %v802
    %1296 = vmatpush.msra.mxu0 %v798
    %1297 = vmatpush.msra.mxu0 %v794
    %1298 = vmatpush.msra.mxu0 %v790
    %1299 = vmatpush.msra.mxu0 %v786
    %1300 = vmatpush.msra.mxu0 %v782
    %1301 = vmatmul.f32.gmra.mxu0 %v775
    %v1302 = vpop.f32.mrf.mxu0
    %v1303 = vadd.f32 %v1040, %v1302
    %1304 = vdwg.mxu0
    %1305 = vmatpush.msra.mxu0 %v906
    %1306 = vmatpush.msra.mxu0 %v902
    %1307 = vmatpush.msra.mxu0 %v898
    %1308 = vmatpush.msra.mxu0 %v894
    %1309 = vmatpush.msra.mxu0 %v890
    %1310 = vmatpush.msra.mxu0 %v886
    %1311 = vmatpush.msra.mxu0 %v882
    %1312 = vmatpush.msra.mxu0 %v878
    %1313 = vmatpush.msra.mxu0 %v874
    %1314 = vmatpush.msra.mxu0 %v870
    %1315 = vmatpush.msra.mxu0 %v866
    %1316 = vmatpush.msra.mxu0 %v862
    %1317 = vmatpush.msra.mxu0 %v858
    %1318 = vmatpush.msra.mxu0 %v854
    %1319 = vmatpush.msra.mxu0 %v850
    %1320 = vmatpush.msra.mxu0 %v846
    %1321 = vmatmul.f32.gmra.mxu0 %v776
    %v1322 = vpop.f32.mrf.mxu0
    %v1323 = vadd.f32 %v1303, %v1322
    %1324 = vdwg.mxu0
    %1325 = vmatpush.msra.mxu0 %v970
    %1326 = vmatpush.msra.mxu0 %v966
    %1327 = vmatpush.msra.mxu0 %v962
    %1328 = vmatpush.msra.mxu0 %v958
    %1329 = vmatpush.msra.mxu0 %v954
    %1330 = vmatpush.msra.mxu0 %v950
    %1331 = vmatpush.msra.mxu0 %v946
    %1332 = vmatpush.msra.mxu0 %v942
    %1333 = vmatpush.msra.mxu0 %v938
    %1334 = vmatpush.msra.mxu0 %v934
    %1335 = vmatpush.msra.mxu0 %v930
    %1336 = vmatpush.msra.mxu0 %v926
    %1337 = vmatpush.msra.mxu0 %v922
    %1338 = vmatpush.msra.mxu0 %v918
    %1339 = vmatpush.msra.mxu0 %v914
    %1340 = vmatpush.msra.mxu0 %v910
    %1341 = vmatmul.f32.gmra.mxu0 %v777
    %v1342 = vpop.f32.mrf.mxu0
    %v1343 = vadd.f32 %v1323, %v1342
    %1344 = vdwg.mxu0
    %1345 = vmatpush.msra.mxu0 %v1034
    %1346 = vmatpush.msra.mxu0 %v1030
    %1347 = vmatpush.msra.mxu0 %v1026
    %1348 = vmatpush.msra.mxu0 %v1022
    %1349 = vmatpush.msra.mxu0 %v1018
    %1350 = vmatpush.msra.mxu0 %v1014
    %1351 = vmatpush.msra.mxu0 %v1010
    %1352 = vmatpush.msra.mxu0 %v1006
    %1353 = vmatpush.msra.mxu0 %v1002
    %1354 = vmatpush.msra.mxu0 %v998
    %1355 = vmatpush.msra.mxu0 %v994
    %1356 = vmatpush.msra.mxu0 %v990
    %1357 = vmatpush.msra.mxu0 %v986
    %1358 = vmatpush.msra.mxu0 %v982
    %1359 = vmatpush.msra.mxu0 %v978
    %1360 = vmatpush.msra.mxu0 %v974
    %1361 = vmatmul.f32.gmra.mxu0 %v778
    %v1362 = vpop.f32.mrf.mxu0
    %v1363 = vadd.f32 %v1343, %v1362
    %1364 = vdwg.mxu0
    %v1365 = vmul.f32 %v1123, 0.01
    %v1366 = vmul.f32 %v1203, 0.01
    %v1367 = vmul.f32 %v1283, 0.01
    %v1368 = vmul.f32 %v1363, 0.01
    %v1369 = vmax.f32 %v1123, %v1365
    %v1370 = vmax.f32 %v1203, %v1366
    %v1371 = vmax.f32 %v1283, %v1367
    %v1372 = vmax.f32 %v1363, %v1368
    %v1373 = vld [vmem:[%s7] sm:$0xff]
    %v1374 = vld [vmem:[%s7 + $0x8] sm:$0xff]
    %v1375 = vld [vmem:[%s7 + $0x10] sm:$0xff]
    %v1376 = vld [vmem:[%s7 + $0x18] sm:$0xff]
    %v1377 = vld [vmem:[%s7 + $0x20] sm:$0xff]
    %v1378 = vld [vmem:[%s7 + $0x28] sm:$0xff]
    %v1379 = vld [vmem:[%s7 + $0x30] sm:$0xff]
    %v1380 = vld [vmem:[%s7 + $0x38] sm:$0xff]
    %v1381 = vld [vmem:[%s7 + $0x40] sm:$0xff]
    %v1382 = vld [vmem:[%s7 + $0x48] sm:$0xff]
    %v1383 = vld [vmem:[%s7 + $0x50] sm:$0xff]
    %v1384 = vld [vmem:[%s7 + $0x58] sm:$0xff]
    %v1385 = vld [vmem:[%s7 + $0x60] sm:$0xff]
    %v1386 = vld [vmem:[%s7 + $0x68] sm:$0xff]
    %v1387 = vld [vmem:[%s7 + $0x70] sm:$0xff]
    %v1388 = vld [vmem:[%s7 + $0x78] sm:$0xff]
    %v1389 = vld [vmem:[%s7 + $0x80] sm:$0xff]
    %v1390 = vld [vmem:[%s7 + $0x88] sm:$0xff]
    %v1391 = vld [vmem:[%s7 + $0x90] sm:$0xff]
    %v1392 = vld [vmem:[%s7 + $0x98] sm:$0xff]
    %v1393 = vld [vmem:[%s7 + $0xa0] sm:$0xff]
    %v1394 = vld [vmem:[%s7 + $0xa8] sm:$0xff]
    %v1395 = vld [vmem:[%s7 + $0xb0] sm:$0xff]
    %v1396 = vld [vmem:[%s7 + $0xb8] sm:$0xff]
    %v1397 = vld [vmem:[%s7 + $0xc0] sm:$0xff]
    %v1398 = vld [vmem:[%s7 + $0xc8] sm:$0xff]
    %v1399 = vld [vmem:[%s7 + $0xd0] sm:$0xff]
    %v1400 = vld [vmem:[%s7 + $0xd8] sm:$0xff]
    %v1401 = vld [vmem:[%s7 + $0xe0] sm:$0xff]
    %v1402 = vld [vmem:[%s7 + $0xe8] sm:$0xff]
    %v1403 = vld [vmem:[%s7 + $0xf0] sm:$0xff]
    %v1404 = vld [vmem:[%s7 + $0xf8] sm:$0xff]
    %v1405 = vld [vmem:[%s7 + $0x100] sm:$0xff]
    %v1406 = vld [vmem:[%s7 + $0x108] sm:$0xff]
    %v1407 = vld [vmem:[%s7 + $0x110] sm:$0xff]
    %v1408 = vld [vmem:[%s7 + $0x118] sm:$0xff]
    %v1409 = vld [vmem:[%s7 + $0x120] sm:$0xff]
    %v1410 = vld [vmem:[%s7 + $0x128] sm:$0xff]
    %v1411 = vld [vmem:[%s7 + $0x130] sm:$0xff]
    %v1412 = vld [vmem:[%s7 + $0x138] sm:$0xff]
    %v1413 = vld [vmem:[%s7 + $0x140] sm:$0xff]
    %v1414 = vld [vmem:[%s7 + $0x148] sm:$0xff]
    %v1415 = vld [vmem:[%s7 + $0x150] sm:$0xff]
    %v1416 = vld [vmem:[%s7 + $0x158] sm:$0xff]
    %v1417 = vld [vmem:[%s7 + $0x160] sm:$0xff]
    %v1418 = vld [vmem:[%s7 + $0x168] sm:$0xff]
    %v1419 = vld [vmem:[%s7 + $0x170] sm:$0xff]
    %v1420 = vld [vmem:[%s7 + $0x178] sm:$0xff]
    %v1421 = vld [vmem:[%s7 + $0x180] sm:$0xff]
    %v1422 = vld [vmem:[%s7 + $0x188] sm:$0xff]
    %v1423 = vld [vmem:[%s7 + $0x190] sm:$0xff]
    %v1424 = vld [vmem:[%s7 + $0x198] sm:$0xff]
    %v1425 = vld [vmem:[%s7 + $0x1a0] sm:$0xff]
    %v1426 = vld [vmem:[%s7 + $0x1a8] sm:$0xff]
    %v1427 = vld [vmem:[%s7 + $0x1b0] sm:$0xff]
    %v1428 = vld [vmem:[%s7 + $0x1b8] sm:$0xff]
    %v1429 = vld [vmem:[%s7 + $0x1c0] sm:$0xff]
    %v1430 = vld [vmem:[%s7 + $0x1c8] sm:$0xff]
    %v1431 = vld [vmem:[%s7 + $0x1d0] sm:$0xff]
    %v1432 = vld [vmem:[%s7 + $0x1d8] sm:$0xff]
    %v1433 = vld [vmem:[%s7 + $0x1e0] sm:$0xff]
    %v1434 = vld [vmem:[%s7 + $0x1e8] sm:$0xff]
    %v1435 = vld [vmem:[%s7 + $0x1f0] sm:$0xff]
    %v1436 = vld [vmem:[%s7 + $0x1f8] sm:$0xff]
    %v1437 = vld [vmem:[#allocation2] sm:$0x1]
    %v1439 = vperm.slane %v1437, 0
    %1441 = vmatpush.msra.mxu0 %v1388
    %1442 = vmatpush.msra.mxu0 %v1387
    %1443 = vmatpush.msra.mxu0 %v1386
    %1444 = vmatpush.msra.mxu0 %v1385
    %1445 = vmatpush.msra.mxu0 %v1384
    %1446 = vmatpush.msra.mxu0 %v1383
    %1447 = vmatpush.msra.mxu0 %v1382
    %1448 = vmatpush.msra.mxu0 %v1381
    %1449 = vmatpush.msra.mxu0 %v1380
    %1450 = vmatpush.msra.mxu0 %v1379
    %1451 = vmatpush.msra.mxu0 %v1378
    %1452 = vmatpush.msra.mxu0 %v1377
    %1453 = vmatpush.msra.mxu0 %v1376
    %1454 = vmatpush.msra.mxu0 %v1375
    %1455 = vmatpush.msra.mxu0 %v1374
    %1456 = vmatpush.msra.mxu0 %v1373
    %1457 = vmatmul.f32.gmra.mxu0 %v1369
    %v1458 = vpop.f32.mrf.mxu0
    %v1459 = vadd.f32 %v1439, %v1458
    %1460 = vdwg.mxu0
    %1461 = vmatpush.msra.mxu0 %v1404
    %1462 = vmatpush.msra.mxu0 %v1403
    %1463 = vmatpush.msra.mxu0 %v1402
    %1464 = vmatpush.msra.mxu0 %v1401
    %1465 = vmatpush.msra.mxu0 %v1400
    %1466 = vmatpush.msra.mxu0 %v1399
    %1467 = vmatpush.msra.mxu0 %v1398
    %1468 = vmatpush.msra.mxu0 %v1397
    %1469 = vmatpush.msra.mxu0 %v1396
    %1470 = vmatpush.msra.mxu0 %v1395
    %1471 = vmatpush.msra.mxu0 %v1394
    %1472 = vmatpush.msra.mxu0 %v1393
    %1473 = vmatpush.msra.mxu0 %v1392
    %1474 = vmatpush.msra.mxu0 %v1391
    %1475 = vmatpush.msra.mxu0 %v1390
    %1476 = vmatpush.msra.mxu0 %v1389
    %1477 = vmatmul.f32.gmra.mxu0 %v1370
    %v1478 = vpop.f32.mrf.mxu0
    %v1479 = vadd.f32 %v1459, %v1478
    %1480 = vdwg.mxu0
    %1481 = vmatpush.msra.mxu0 %v1420
    %1482 = vmatpush.msra.mxu0 %v1419
    %1483 = vmatpush.msra.mxu0 %v1418
    %1484 = vmatpush.msra.mxu0 %v1417
    %1485 = vmatpush.msra.mxu0 %v1416
    %1486 = vmatpush.msra.mxu0 %v1415
    %1487 = vmatpush.msra.mxu0 %v1414
    %1488 = vmatpush.msra.mxu0 %v1413
    %1489 = vmatpush.msra.mxu0 %v1412
    %1490 = vmatpush.msra.mxu0 %v1411
    %1491 = vmatpush.msra.mxu0 %v1410
    %1492 = vmatpush.msra.mxu0 %v1409
    %1493 = vmatpush.msra.mxu0 %v1408
    %1494 = vmatpush.msra.mxu0 %v1407
    %1495 = vmatpush.msra.mxu0 %v1406
    %1496 = vmatpush.msra.mxu0 %v1405
    %1497 = vmatmul.f32.gmra.mxu0 %v1371
    %v1498 = vpop.f32.mrf.mxu0
    %v1499 = vadd.f32 %v1479, %v1498
    %1500 = vdwg.mxu0
    %1501 = vmatpush.msra.mxu0 %v1436
    %1502 = vmatpush.msra.mxu0 %v1435
    %1503 = vmatpush.msra.mxu0 %v1434
    %1504 = vmatpush.msra.mxu0 %v1433
    %1505 = vmatpush.msra.mxu0 %v1432
    %1506 = vmatpush.msra.mxu0 %v1431
    %1507 = vmatpush.msra.mxu0 %v1430
    %1508 = vmatpush.msra.mxu0 %v1429
    %1509 = vmatpush.msra.mxu0 %v1428
    %1510 = vmatpush.msra.mxu0 %v1427
    %1511 = vmatpush.msra.mxu0 %v1426
    %1512 = vmatpush.msra.mxu0 %v1425
    %1513 = vmatpush.msra.mxu0 %v1424
    %1514 = vmatpush.msra.mxu0 %v1423
    %1515 = vmatpush.msra.mxu0 %v1422
    %1516 = vmatpush.msra.mxu0 %v1421
    %1517 = vmatmul.f32.gmra.mxu0 %v1372
    %v1518 = vpop.f32.mrf.mxu0
    %v1519 = vadd.f32 %v1499, %v1518
    %1520 = vdwg.mxu0
    %vm1521 = vcmask 1024
    %1522 = vst.msk [vmem:[%s9] sm:$0x3] %vm1521, %v1519
    // Predicated region
    $region46: #{tpu_custom_call.1} parent=1 // pred_check
      _
    $region47: #{tpu_custom_call.1} parent=1 // pred_check_branch
      %1524 = sbr.rel (0) target = $region49
    $region48: #{tpu_custom_call.1} parent=1 // pred_region
      _
    $region49: #{tpu_custom_call.1} parent=1 // pred_fallthru
      _
    // Predicated region
    $region50: #{tpu_custom_call.1} parent=1 // pred_check
      _
    $region51: #{tpu_custom_call.1} parent=1 // pred_check_branch
      %1526 = sbr.rel (0) target = $region53
    $region52: #{tpu_custom_call.1} parent=1 // pred_region
      _
    $region53: #{tpu_custom_call.1} parent=1 // pred_fallthru
      _
    %1527 = vsyncpa [#allocation4], 1
    %1528 = vsyncpa [#allocation6], 1

</llo_original>
